<compile_context>
chip_gen: v7x
topology: tpu7x:2x2x1
jax: 0.10.0
libtpu: 0.0.40
codegen_flags: <defaults>
</compile_context>

<pallas_src>
import functools

import jax
import jax.numpy as jnp
from jax.experimental import pallas as pl
from jax.experimental.pallas import tpu as pltpu


def _mlp_kernel(x_ref,
                w1_ref, b1_ref,
                w2_ref, b2_ref,
                w3_ref, b3_ref,
                w4_ref, b4_ref,
                o_ref):
    # Activations carried as (features, batch_tile); batch is the lane dim.
    # Layer 1: (512, D) @ (D, TB) -> f32 acc, bias add + ReLU in f32.
    h = jnp.dot(w1_ref[...], x_ref[...], preferred_element_type=jnp.float32)
    h = jnp.maximum(h + b1_ref[...], 0.0)
    # Layer 2: (256, 512) @ (512, TB)   (bf16 operands, f32 accumulation)
    h = jnp.dot(w2_ref[...], h.astype(jnp.bfloat16),
                preferred_element_type=jnp.float32)
    h = jnp.maximum(h + b2_ref[...], 0.0)
    # Layer 3: (128, 256) @ (256, TB)
    h = jnp.dot(w3_ref[...], h.astype(jnp.bfloat16),
                preferred_element_type=jnp.float32)
    h = jnp.maximum(h + b3_ref[...], 0.0)
    # Layer 4 (128 -> 1): VPU multiply by the (128, 1) weight column and reduce
    # over the feature (sublane) axis -- avoids a degenerate N=1 MXU matmul and
    # lands the result directly lane-dense as (1, TB).
    out = jnp.sum(h * w4_ref[...], axis=0, keepdims=True) + b4_ref[...]
    o_ref[...] = out.astype(o_ref.dtype)


def pack_params(params):
    """Pack PyTorch-layout params ((out,in) weights, (out,) biases) for the kernel.

    Layers 1-3: weights cast to bf16 (MXU operands), biases as f32 (out, 1)
    columns.  Layer 4: weight kept f32 as a (128, 1) column (used on the VPU),
    bias as a f32 (1, 1) scalar block.
    """
    (w1, b1), (w2, b2), (w3, b3), (w4, b4) = params
    return (
        w1.astype(jnp.bfloat16), b1.reshape(-1, 1).astype(jnp.float32),
        w2.astype(jnp.bfloat16), b2.reshape(-1, 1).astype(jnp.float32),
        w3.astype(jnp.bfloat16), b3.reshape(-1, 1).astype(jnp.float32),
        w4.reshape(-1, 1).astype(jnp.float32),
        b4.reshape(1, 1).astype(jnp.float32),
    )


@functools.partial(jax.jit, static_argnames=("tb",))
def heart_disease_net_forward(x, packed_params, *, tb=1024):
    """Pallas forward pass.  x: (B, D) float32 -> (B,) float32."""
    assert tb % 128 == 0, "batch tile must be a multiple of 128 lanes"
    w1, b1, w2, b2, w3, b3, w4, b4 = packed_params
    B, D = x.shape

    # Batch lives in the lane dim: clamp the tile to what B needs, pad B up to
    # a tile multiple, and transpose x to (D, B_pad) (layout plumbing stays in
    # the wrapper, not the kernel).
    tb = min(tb, pl.cdiv(B, 128) * 128)
    grid_b = pl.cdiv(B, tb)
    b_pad = grid_b * tb
    xt = jnp.pad(x.T, ((0, 0), (0, b_pad - B))).astype(jnp.bfloat16)

    h1, h2, h3 = w1.shape[0], w2.shape[0], w3.shape[0]   # 512, 256, 128

    const = lambda shape: pl.BlockSpec(shape, lambda i: (0, 0))  # VMEM-resident

    out = pl.pallas_call(
        _mlp_kernel,
        out_shape=jax.ShapeDtypeStruct((1, b_pad), jnp.float32),
        grid_spec=pltpu.PrefetchScalarGridSpec(
            num_scalar_prefetch=0,
            grid=(grid_b,),
            in_specs=[
                pl.BlockSpec((D, tb), lambda i: (0, i)),   # x tile (streamed)
                const((h1, D)), const((h1, 1)),            # w1, b1 (resident)
                const((h2, h1)), const((h2, 1)),           # w2, b2
                const((h3, h2)), const((h3, 1)),           # w3, b3
                const((h3, 1)), const((1, 1)),             # w4, b4
            ],
            out_specs=pl.BlockSpec((1, tb), lambda i: (0, i)),   # lane-dense row
        ),
        compiler_params=pltpu.CompilerParams(
            dimension_semantics=("parallel",),        # shard batch tiles across TCs
            vmem_limit_bytes=32 * 1024 * 1024,        # explicit (v5e default is 16 MiB)
        ),
    )(xt, w1, b1, w2, b2, w3, b3, w4, b4)

    # Drop batch padding; the [0] indexing is the module's .squeeze(1).
    return out[0, :B]


def init_params(key, input_dim):
    """PyTorch nn.Linear default init: W, b ~ U(-1/sqrt(fan_in), 1/sqrt(fan_in)).
    Weights stored in PyTorch (out_features, in_features) layout."""
    dims = [(input_dim, 512), (512, 256), (256, 128), (128, 1)]
    params = []
    for fan_in, fan_out in dims:
        key, kw, kb = jax.random.split(key, 3)
        bound = 1.0 / float(fan_in) ** 0.5
        w = jax.random.uniform(kw, (fan_out, fan_in), jnp.float32, -bound, bound)
        b = jax.random.uniform(kb, (fan_out,), jnp.float32, -bound, bound)
        params.append((w, b))
    return params


def _reference_forward_f32(x, params):
    h = x
    for i, (w, b) in enumerate(params):
        h = h @ w.T + b
        if i < len(params) - 1:
            h = jnp.maximum(h, 0.0)
    return h[:, 0]


def _reference_forward_bf16(x, params):
    # Matches the kernel's numerics: bf16 matmul operands, f32 accumulation,
    # f32 bias/ReLU; the final (128 -> 1) layer is done entirely in f32.
    h = x
    for w, b in params[:-1]:
        h = jnp.dot(h.astype(jnp.bfloat16), w.T.astype(jnp.bfloat16),
                    preferred_element_type=jnp.float32) + b
        h = jnp.maximum(h, 0.0)
    w4, b4 = params[-1]
    h = h @ w4.T + b4
    return h[:, 0]


if __name__ == "__main__":
    key = jax.random.PRNGKey(0)
    key, k_small, k_large = jax.random.split(key, 3)

    input_dim = 16   # heart-disease-style tabular feature count
    params = init_params(key, input_dim)
    packed = pack_params(params)

    # Small batch (matches the original test regime).
    x_small = jax.random.normal(k_small, (8, input_dim), jnp.float32)
    out_small = jax.block_until_ready(heart_disease_net_forward(x_small, packed))
    assert out_small.shape == (8,), out_small.shape

    # Larger non-tile-multiple batch: exercises the batch grid + padding path.
    x_large = jax.random.normal(k_large, (300, input_dim), jnp.float32)
    out_large = jax.block_until_ready(
        heart_disease_net_forward(x_large, packed, tb=128))
    assert out_large.shape == (300,), out_large.shape

    for x, out in ((x_small, out_small), (x_large, out_large)):
        ref16 = _reference_forward_bf16(x, params)   # same numerics as kernel
        ref32 = _reference_forward_f32(x, params)    # full-f32 semantics check
        assert jnp.allclose(out, ref16, atol=1e-3, rtol=1e-3), \
            float(jnp.max(jnp.abs(out - ref16)))
        assert jnp.allclose(out, ref32, atol=5e-2, rtol=5e-2), \
            float(jnp.max(jnp.abs(out - ref32)))

    print("KERNEL_OK")
</pallas_src>

<mosaic_0001>
module attributes {stable_mosaic.version = 11 : i64} {
  func.func @_mlp_kernel(%arg0: i32, %arg1: memref<16x128xbf16, #tpu.memory_space<vmem>>, %arg2: memref<512x16xbf16, #tpu.memory_space<vmem>>, %arg3: memref<512x1xf32, #tpu.memory_space<vmem>>, %arg4: memref<256x512xbf16, #tpu.memory_space<vmem>>, %arg5: memref<256x1xf32, #tpu.memory_space<vmem>>, %arg6: memref<128x256xbf16, #tpu.memory_space<vmem>>, %arg7: memref<128x1xf32, #tpu.memory_space<vmem>>, %arg8: memref<128x1xf32, #tpu.memory_space<vmem>>, %arg9: memref<1x1xf32, #tpu.memory_space<vmem>>, %arg10: memref<1x128xf32, #tpu.memory_space<vmem>>) attributes {dimension_semantics = [#tpu.dimension_semantics<parallel>], iteration_bounds = array<i64: 1>, scalar_prefetch = 0 : i64, scratch_operands = 0 : i64, tpu.core_type = #tpu.core_type<tc>, window_params = [{transform_indices = @transform_0, window_bounds = array<i64: 16, 128>}, {pipeline_mode = #tpu.pipeline_mode<synchronous>, transform_indices = @transform_1, window_bounds = array<i64: 512, 16>}, {pipeline_mode = #tpu.pipeline_mode<synchronous>, transform_indices = @transform_2, window_bounds = array<i64: 512, 1>}, {pipeline_mode = #tpu.pipeline_mode<synchronous>, transform_indices = @transform_3, window_bounds = array<i64: 256, 512>}, {pipeline_mode = #tpu.pipeline_mode<synchronous>, transform_indices = @transform_4, window_bounds = array<i64: 256, 1>}, {pipeline_mode = #tpu.pipeline_mode<synchronous>, transform_indices = @transform_5, window_bounds = array<i64: 128, 256>}, {pipeline_mode = #tpu.pipeline_mode<synchronous>, transform_indices = @transform_6, window_bounds = array<i64: 128, 1>}, {pipeline_mode = #tpu.pipeline_mode<synchronous>, transform_indices = @transform_7, window_bounds = array<i64: 128, 1>}, {pipeline_mode = #tpu.pipeline_mode<synchronous>, transform_indices = @transform_8, window_bounds = array<i64: 1, 1>}, {transform_indices = @transform_9, window_bounds = array<i64: 1, 128>}]} {
    %c0 = arith.constant 0 : index
    %c0_0 = arith.constant 0 : index
    %0 = vector.load %arg2[%c0, %c0_0] : memref<512x16xbf16, #tpu.memory_space<vmem>>, vector<512x16xbf16>
    %c0_1 = arith.constant 0 : index
    %c0_2 = arith.constant 0 : index
    %1 = vector.load %arg1[%c0_1, %c0_2] : memref<16x128xbf16, #tpu.memory_space<vmem>>, vector<16x128xbf16>
    %cst = arith.constant dense<0.000000e+00> : vector<512x128xf32>
    %2 = tpu.matmul %0, %1, %cst {dimension_numbers = #tpu.dot_dimension_numbers<[1], [0], [0], [1], [0, 0, 1, 1], [], []>} : vector<512x16xbf16>, vector<16x128xbf16>, vector<512x128xf32> -> vector<512x128xf32>
    %c0_3 = arith.constant 0 : index
    %c0_4 = arith.constant 0 : index
    %3 = vector.load %arg3[%c0_3, %c0_4] : memref<512x1xf32, #tpu.memory_space<vmem>>, vector<512x1xf32>
    %4 = vector.broadcast %3 : vector<512x1xf32> to vector<512x128xf32>
    %5 = arith.addf %2, %4 : vector<512x128xf32>
    %cst_5 = arith.constant 0.000000e+00 : f32
    %6 = vector.broadcast %cst_5 : f32 to vector<512x128xf32>
    %7 = arith.maximumf %5, %6 : vector<512x128xf32>
    %c0_6 = arith.constant 0 : index
    %c0_7 = arith.constant 0 : index
    %8 = vector.load %arg4[%c0_6, %c0_7] : memref<256x512xbf16, #tpu.memory_space<vmem>>, vector<256x512xbf16>
    %9 = arith.truncf %7 : vector<512x128xf32> to vector<512x128xbf16>
    %cst_8 = arith.constant dense<0.000000e+00> : vector<256x128xf32>
    %10 = tpu.matmul %8, %9, %cst_8 {dimension_numbers = #tpu.dot_dimension_numbers<[1], [0], [0], [1], [0, 0, 1, 1], [], []>} : vector<256x512xbf16>, vector<512x128xbf16>, vector<256x128xf32> -> vector<256x128xf32>
    %c0_9 = arith.constant 0 : index
    %c0_10 = arith.constant 0 : index
    %11 = vector.load %arg5[%c0_9, %c0_10] : memref<256x1xf32, #tpu.memory_space<vmem>>, vector<256x1xf32>
    %12 = vector.broadcast %11 : vector<256x1xf32> to vector<256x128xf32>
    %13 = arith.addf %10, %12 : vector<256x128xf32>
    %cst_11 = arith.constant 0.000000e+00 : f32
    %14 = vector.broadcast %cst_11 : f32 to vector<256x128xf32>
    %15 = arith.maximumf %13, %14 : vector<256x128xf32>
    %c0_12 = arith.constant 0 : index
    %c0_13 = arith.constant 0 : index
    %16 = vector.load %arg6[%c0_12, %c0_13] : memref<128x256xbf16, #tpu.memory_space<vmem>>, vector<128x256xbf16>
    %17 = arith.truncf %15 : vector<256x128xf32> to vector<256x128xbf16>
    %cst_14 = arith.constant dense<0.000000e+00> : vector<128x128xf32>
    %18 = tpu.matmul %16, %17, %cst_14 {dimension_numbers = #tpu.dot_dimension_numbers<[1], [0], [0], [1], [0, 0, 1, 1], [], []>} : vector<128x256xbf16>, vector<256x128xbf16>, vector<128x128xf32> -> vector<128x128xf32>
    %c0_15 = arith.constant 0 : index
    %c0_16 = arith.constant 0 : index
    %19 = vector.load %arg7[%c0_15, %c0_16] : memref<128x1xf32, #tpu.memory_space<vmem>>, vector<128x1xf32>
    %20 = vector.broadcast %19 : vector<128x1xf32> to vector<128x128xf32>
    %21 = arith.addf %18, %20 : vector<128x128xf32>
    %cst_17 = arith.constant 0.000000e+00 : f32
    %22 = vector.broadcast %cst_17 : f32 to vector<128x128xf32>
    %23 = arith.maximumf %21, %22 : vector<128x128xf32>
    %c0_18 = arith.constant 0 : index
    %c0_19 = arith.constant 0 : index
    %24 = vector.load %arg8[%c0_18, %c0_19] : memref<128x1xf32, #tpu.memory_space<vmem>>, vector<128x1xf32>
    %25 = vector.broadcast %24 : vector<128x1xf32> to vector<128x128xf32>
    %26 = arith.mulf %23, %25 : vector<128x128xf32>
    %cst_20 = arith.constant dense<0.000000e+00> : vector<128xf32>
    %27 = vector.multi_reduction <add>, %26, %cst_20 [0] : vector<128x128xf32> to vector<128xf32>
    %28 = vector.shape_cast %27 : vector<128xf32> to vector<1x128xf32>
    %c0_21 = arith.constant 0 : index
    %c0_22 = arith.constant 0 : index
    %29 = vector.load %arg9[%c0_21, %c0_22] : memref<1x1xf32, #tpu.memory_space<vmem>>, vector<1x1xf32>
    %30 = vector.broadcast %29 : vector<1x1xf32> to vector<1x128xf32>
    %31 = arith.addf %28, %30 : vector<1x128xf32>
    %c0_23 = arith.constant 0 : index
    %c0_24 = arith.constant 0 : index
    %32 = vector.load %arg10[%c0_23, %c0_24] : memref<1x128xf32, #tpu.memory_space<vmem>>, vector<1x128xf32>
    tpu.vector_store %arg10[%c0_23, %c0_24], %31 {strides = array<i32>} : memref<1x128xf32, #tpu.memory_space<vmem>>, vector<1x128xf32>,
    return
  }
  func.func @transform_0(%arg0: i32) -> (i32, i32) {
    %c0_i32 = arith.constant 0 : i32
    %c0_i32_0 = arith.constant 0 : i32
    return %c0_i32, %arg0 : i32, i32
  }
  func.func @transform_1(%arg0: i32) -> (i32, i32) {
    %c0_i32 = arith.constant 0 : i32
    %c0_i32_0 = arith.constant 0 : i32
    %c0_i32_1 = arith.constant 0 : i32
    return %c0_i32, %c0_i32_0 : i32, i32
  }
  func.func @transform_2(%arg0: i32) -> (i32, i32) {
    %c0_i32 = arith.constant 0 : i32
    %c0_i32_0 = arith.constant 0 : i32
    %c0_i32_1 = arith.constant 0 : i32
    return %c0_i32, %c0_i32_0 : i32, i32
  }
  func.func @transform_3(%arg0: i32) -> (i32, i32) {
    %c0_i32 = arith.constant 0 : i32
    %c0_i32_0 = arith.constant 0 : i32
    %c0_i32_1 = arith.constant 0 : i32
    return %c0_i32, %c0_i32_0 : i32, i32
  }
  func.func @transform_4(%arg0: i32) -> (i32, i32) {
    %c0_i32 = arith.constant 0 : i32
    %c0_i32_0 = arith.constant 0 : i32
    %c0_i32_1 = arith.constant 0 : i32
    return %c0_i32, %c0_i32_0 : i32, i32
  }
  func.func @transform_5(%arg0: i32) -> (i32, i32) {
    %c0_i32 = arith.constant 0 : i32
    %c0_i32_0 = arith.constant 0 : i32
    %c0_i32_1 = arith.constant 0 : i32
    return %c0_i32, %c0_i32_0 : i32, i32
  }
  func.func @transform_6(%arg0: i32) -> (i32, i32) {
    %c0_i32 = arith.constant 0 : i32
    %c0_i32_0 = arith.constant 0 : i32
    %c0_i32_1 = arith.constant 0 : i32
    return %c0_i32, %c0_i32_0 : i32, i32
  }
  func.func @transform_7(%arg0: i32) -> (i32, i32) {
    %c0_i32 = arith.constant 0 : i32
    %c0_i32_0 = arith.constant 0 : i32
    %c0_i32_1 = arith.constant 0 : i32
    return %c0_i32, %c0_i32_0 : i32, i32
  }
  func.func @transform_8(%arg0: i32) -> (i32, i32) {
    %c0_i32 = arith.constant 0 : i32
    %c0_i32_0 = arith.constant 0 : i32
    %c0_i32_1 = arith.constant 0 : i32
    return %c0_i32, %c0_i32_0 : i32, i32
  }
  func.func @transform_9(%arg0: i32) -> (i32, i32) {
    %c0_i32 = arith.constant 0 : i32
    %c0_i32_0 = arith.constant 0 : i32
    return %c0_i32, %arg0 : i32, i32
  }
}

</mosaic_0001>

<llo_original>
// kernel: heart_disease_net_forward.1
$region0: #{heart_disease_net_forward.1}
  #allocation0 [shape = 'u32[]', space=smem, size = 0x4, offset = 0x4, fixed_abs, tag = 'smem constant byte address 0x4 - core index']
  #allocation1 [shape = 'u32[144,128]{1,0:T(1,128)}', space=vmem, size = 0x12000, scoped, tag = 'internal scratch']
  #allocation2 [shape = 'f32[1,1]{1,0:T(1,128)S(1)}', space=vmem, size = 0x200, scoped, tag = 'scoped memory for heart_disease_net_forward.1']
  %s0 = inlined_call_operand.vmem [shape: bf16[16,128], index: 0, kind: input, shape index: {}]
  %s1 = inlined_call_operand.vmem [shape: bf16[512,16], index: 1, kind: input, shape index: {}]
  %s2 = inlined_call_operand.vmem [shape: f32[512,1], index: 2, kind: input, shape index: {}]
  %s3 = inlined_call_operand.vmem [shape: bf16[256,512], index: 3, kind: input, shape index: {}]
  %s4 = inlined_call_operand.vmem [shape: f32[256,1], index: 4, kind: input, shape index: {}]
  %s5 = inlined_call_operand.vmem [shape: bf16[128,256], index: 5, kind: input, shape index: {}]
  %s6 = inlined_call_operand.vmem [shape: f32[128,1], index: 6, kind: input, shape index: {}]
  %s7 = inlined_call_operand.vmem [shape: f32[128,1], index: 7, kind: input, shape index: {}]
  %s8 = inlined_call_operand.<no memory space> [shape: f32[1,1], index: 8, kind: input, shape index: {}]
  %s9 = inlined_call_operand.vmem [shape: f32[1,128], index: 9, kind: output, shape index: {}]
  %s10 = sld [smem:[#allocation0]]
  $region46: #{heart_disease_net_forward.1} parent=0
    _
  %s12 = ssub.s32 1, %s10
  %s13 = scalar_select 0, %s12, %s10
  %v14 = vstv %s8
  %15 = vst [vmem:[#allocation2] sm:$0x1] %v14
  // Predicated region
  $region2: #{heart_disease_net_forward.1} parent=0 // pred_check
    _
  $region3: #{heart_disease_net_forward.1} parent=0 // pred_check_branch
    %17 = sbr.rel (0) target = $region5
  $region4: #{heart_disease_net_forward.1} parent=0 // pred_region
    _
  $region5: #{heart_disease_net_forward.1} parent=0 // pred_fallthru
    _
  // Predicated region
  $region6: #{heart_disease_net_forward.1} parent=0 // pred_check
    _
  $region7: #{heart_disease_net_forward.1} parent=0 // pred_check_branch
    %19 = sbr.rel (0) target = $region9
  $region8: #{heart_disease_net_forward.1} parent=0 // pred_region
    _
  $region9: #{heart_disease_net_forward.1} parent=0 // pred_fallthru
    _
  // Predicated region
  $region10: #{heart_disease_net_forward.1} parent=0 // pred_check
    _
  $region11: #{heart_disease_net_forward.1} parent=0 // pred_check_branch
    %21 = sbr.rel (0) target = $region13
  $region12: #{heart_disease_net_forward.1} parent=0 // pred_region
    _
  $region13: #{heart_disease_net_forward.1} parent=0 // pred_fallthru
    _
  // Predicated region
  $region14: #{heart_disease_net_forward.1} parent=0 // pred_check
    _
  $region15: #{heart_disease_net_forward.1} parent=0 // pred_check_branch
    %23 = sbr.rel (0) target = $region17
  $region16: #{heart_disease_net_forward.1} parent=0 // pred_region
    _
  $region17: #{heart_disease_net_forward.1} parent=0 // pred_fallthru
    _
  // Predicated region
  $region18: #{heart_disease_net_forward.1} parent=0 // pred_check
    _
  $region19: #{heart_disease_net_forward.1} parent=0 // pred_check_branch
    %25 = sbr.rel (0) target = $region21
  $region20: #{heart_disease_net_forward.1} parent=0 // pred_region
    _
  $region21: #{heart_disease_net_forward.1} parent=0 // pred_fallthru
    _
  // Predicated region
  $region22: #{heart_disease_net_forward.1} parent=0 // pred_check
    _
  $region23: #{heart_disease_net_forward.1} parent=0 // pred_check_branch
    %27 = sbr.rel (0) target = $region25
  $region24: #{heart_disease_net_forward.1} parent=0 // pred_region
    _
  $region25: #{heart_disease_net_forward.1} parent=0 // pred_fallthru
    _
  // Predicated region
  $region26: #{heart_disease_net_forward.1} parent=0 // pred_check
    _
  $region27: #{heart_disease_net_forward.1} parent=0 // pred_check_branch
    %29 = sbr.rel (0) target = $region29
  $region28: #{heart_disease_net_forward.1} parent=0 // pred_region
    _
  $region29: #{heart_disease_net_forward.1} parent=0 // pred_fallthru
    _
  // Predicated region
  $region30: #{heart_disease_net_forward.1} parent=0 // pred_check
    _
  $region31: #{heart_disease_net_forward.1} parent=0 // pred_check_branch
    %31 = sbr.rel (0) target = $region33
  $region32: #{heart_disease_net_forward.1} parent=0 // pred_region
    _
  $region33: #{heart_disease_net_forward.1} parent=0 // pred_fallthru
    _
  // Predicated region
  $region34: #{heart_disease_net_forward.1} parent=0 // pred_check
    _
  $region35: #{heart_disease_net_forward.1} parent=0 // pred_check_branch
    %33 = sbr.rel (0) target = $region37
  $region36: #{heart_disease_net_forward.1} parent=0 // pred_region
    _
  $region37: #{heart_disease_net_forward.1} parent=0 // pred_fallthru
    _
  %v35 = vld [vmem:[%s1] sm:$0xf]
  %v36 = vld [vmem:[%s1 + $0x4] sm:$0xf]
  %v37 = vld [vmem:[%s1 + $0x8] sm:$0xf]
  %v38 = vld [vmem:[%s1 + $0xc] sm:$0xf]
  %v39 = vld [vmem:[%s1 + $0x10] sm:$0xf]
  %v40 = vld [vmem:[%s1 + $0x14] sm:$0xf]
  %v41 = vld [vmem:[%s1 + $0x18] sm:$0xf]
  %v42 = vld [vmem:[%s1 + $0x1c] sm:$0xf]
  %v43 = vld [vmem:[%s1 + $0x20] sm:$0xf]
  %v44 = vld [vmem:[%s1 + $0x24] sm:$0xf]
  %v45 = vld [vmem:[%s1 + $0x28] sm:$0xf]
  %v46 = vld [vmem:[%s1 + $0x2c] sm:$0xf]
  %v47 = vld [vmem:[%s1 + $0x30] sm:$0xf]
  %v48 = vld [vmem:[%s1 + $0x34] sm:$0xf]
  %v49 = vld [vmem:[%s1 + $0x38] sm:$0xf]
  %v50 = vld [vmem:[%s1 + $0x3c] sm:$0xf]
  %v51 = vld [vmem:[%s1 + $0x40] sm:$0xf]
  %v52 = vld [vmem:[%s1 + $0x44] sm:$0xf]
  %v53 = vld [vmem:[%s1 + $0x48] sm:$0xf]
  %v54 = vld [vmem:[%s1 + $0x4c] sm:$0xf]
  %v55 = vld [vmem:[%s1 + $0x50] sm:$0xf]
  %v56 = vld [vmem:[%s1 + $0x54] sm:$0xf]
  %v57 = vld [vmem:[%s1 + $0x58] sm:$0xf]
  %v58 = vld [vmem:[%s1 + $0x5c] sm:$0xf]
  %v59 = vld [vmem:[%s1 + $0x60] sm:$0xf]
  %v60 = vld [vmem:[%s1 + $0x64] sm:$0xf]
  %v61 = vld [vmem:[%s1 + $0x68] sm:$0xf]
  %v62 = vld [vmem:[%s1 + $0x6c] sm:$0xf]
  %v63 = vld [vmem:[%s1 + $0x70] sm:$0xf]
  %v64 = vld [vmem:[%s1 + $0x74] sm:$0xf]
  %v65 = vld [vmem:[%s1 + $0x78] sm:$0xf]
  %v66 = vld [vmem:[%s1 + $0x7c] sm:$0xf]
  %v67 = vld [vmem:[%s1 + $0x80] sm:$0xf]
  %v68 = vld [vmem:[%s1 + $0x84] sm:$0xf]
  %v69 = vld [vmem:[%s1 + $0x88] sm:$0xf]
  %v70 = vld [vmem:[%s1 + $0x8c] sm:$0xf]
  %v71 = vld [vmem:[%s1 + $0x90] sm:$0xf]
  %v72 = vld [vmem:[%s1 + $0x94] sm:$0xf]
  %v73 = vld [vmem:[%s1 + $0x98] sm:$0xf]
  %v74 = vld [vmem:[%s1 + $0x9c] sm:$0xf]
  %v75 = vld [vmem:[%s1 + $0xa0] sm:$0xf]
  %v76 = vld [vmem:[%s1 + $0xa4] sm:$0xf]
  %v77 = vld [vmem:[%s1 + $0xa8] sm:$0xf]
  %v78 = vld [vmem:[%s1 + $0xac] sm:$0xf]
  %v79 = vld [vmem:[%s1 + $0xb0] sm:$0xf]
  %v80 = vld [vmem:[%s1 + $0xb4] sm:$0xf]
  %v81 = vld [vmem:[%s1 + $0xb8] sm:$0xf]
  %v82 = vld [vmem:[%s1 + $0xbc] sm:$0xf]
  %v83 = vld [vmem:[%s1 + $0xc0] sm:$0xf]
  %v84 = vld [vmem:[%s1 + $0xc4] sm:$0xf]
  %v85 = vld [vmem:[%s1 + $0xc8] sm:$0xf]
  %v86 = vld [vmem:[%s1 + $0xcc] sm:$0xf]
  %v87 = vld [vmem:[%s1 + $0xd0] sm:$0xf]
  %v88 = vld [vmem:[%s1 + $0xd4] sm:$0xf]
  %v89 = vld [vmem:[%s1 + $0xd8] sm:$0xf]
  %v90 = vld [vmem:[%s1 + $0xdc] sm:$0xf]
  %v91 = vld [vmem:[%s1 + $0xe0] sm:$0xf]
  %v92 = vld [vmem:[%s1 + $0xe4] sm:$0xf]
  %v93 = vld [vmem:[%s1 + $0xe8] sm:$0xf]
  %v94 = vld [vmem:[%s1 + $0xec] sm:$0xf]
  %v95 = vld [vmem:[%s1 + $0xf0] sm:$0xf]
  %v96 = vld [vmem:[%s1 + $0xf4] sm:$0xf]
  %v97 = vld [vmem:[%s1 + $0xf8] sm:$0xf]
  %v98 = vld [vmem:[%s1 + $0xfc] sm:$0xf]
  %v99 = vld [vmem:[%s0] sm:$0xf]
  %v100 = vld [vmem:[%s0 + $0x4] sm:$0xf]
  %v101 = vld [vmem:[%s2] sm:$0xff]
  %v102 = vld [vmem:[%s2 + $0x8] sm:$0xff]
  %v103 = vld [vmem:[%s2 + $0x10] sm:$0xff]
  %v104 = vld [vmem:[%s2 + $0x18] sm:$0xff]
  %v105 = vld [vmem:[%s2 + $0x20] sm:$0xff]
  %v106 = vld [vmem:[%s2 + $0x28] sm:$0xff]
  %v107 = vld [vmem:[%s2 + $0x30] sm:$0xff]
  %v108 = vld [vmem:[%s2 + $0x38] sm:$0xff]
  %v109 = vld [vmem:[%s2 + $0x40] sm:$0xff]
  %v110 = vld [vmem:[%s2 + $0x48] sm:$0xff]
  %v111 = vld [vmem:[%s2 + $0x50] sm:$0xff]
  %v112 = vld [vmem:[%s2 + $0x58] sm:$0xff]
  %v113 = vld [vmem:[%s2 + $0x60] sm:$0xff]
  %v114 = vld [vmem:[%s2 + $0x68] sm:$0xff]
  %v115 = vld [vmem:[%s2 + $0x70] sm:$0xff]
  %v116 = vld [vmem:[%s2 + $0x78] sm:$0xff]
  %v117 = vld [vmem:[%s2 + $0x80] sm:$0xff]
  %v118 = vld [vmem:[%s2 + $0x88] sm:$0xff]
  %v119 = vld [vmem:[%s2 + $0x90] sm:$0xff]
  %v120 = vld [vmem:[%s2 + $0x98] sm:$0xff]
  %v121 = vld [vmem:[%s2 + $0xa0] sm:$0xff]
  %v122 = vld [vmem:[%s2 + $0xa8] sm:$0xff]
  %v123 = vld [vmem:[%s2 + $0xb0] sm:$0xff]
  %v124 = vld [vmem:[%s2 + $0xb8] sm:$0xff]
  %v125 = vld [vmem:[%s2 + $0xc0] sm:$0xff]
  %v126 = vld [vmem:[%s2 + $0xc8] sm:$0xff]
  %v127 = vld [vmem:[%s2 + $0xd0] sm:$0xff]
  %v128 = vld [vmem:[%s2 + $0xd8] sm:$0xff]
  %v129 = vld [vmem:[%s2 + $0xe0] sm:$0xff]
  %v130 = vld [vmem:[%s2 + $0xe8] sm:$0xff]
  %v131 = vld [vmem:[%s2 + $0xf0] sm:$0xff]
  %v132 = vld [vmem:[%s2 + $0xf8] sm:$0xff]
  %v133 = vld [vmem:[%s2 + $0x100] sm:$0xff]
  %v134 = vld [vmem:[%s2 + $0x108] sm:$0xff]
  %v135 = vld [vmem:[%s2 + $0x110] sm:$0xff]
  %v136 = vld [vmem:[%s2 + $0x118] sm:$0xff]
  %v137 = vld [vmem:[%s2 + $0x120] sm:$0xff]
  %v138 = vld [vmem:[%s2 + $0x128] sm:$0xff]
  %v139 = vld [vmem:[%s2 + $0x130] sm:$0xff]
  %v140 = vld [vmem:[%s2 + $0x138] sm:$0xff]
  %v141 = vld [vmem:[%s2 + $0x140] sm:$0xff]
  %v142 = vld [vmem:[%s2 + $0x148] sm:$0xff]
  %v143 = vld [vmem:[%s2 + $0x150] sm:$0xff]
  %v144 = vld [vmem:[%s2 + $0x158] sm:$0xff]
  %v145 = vld [vmem:[%s2 + $0x160] sm:$0xff]
  %v146 = vld [vmem:[%s2 + $0x168] sm:$0xff]
  %v147 = vld [vmem:[%s2 + $0x170] sm:$0xff]
  %v148 = vld [vmem:[%s2 + $0x178] sm:$0xff]
  %v149 = vld [vmem:[%s2 + $0x180] sm:$0xff]
  %v150 = vld [vmem:[%s2 + $0x188] sm:$0xff]
  %v151 = vld [vmem:[%s2 + $0x190] sm:$0xff]
  %v152 = vld [vmem:[%s2 + $0x198] sm:$0xff]
  %v153 = vld [vmem:[%s2 + $0x1a0] sm:$0xff]
  %v154 = vld [vmem:[%s2 + $0x1a8] sm:$0xff]
  %v155 = vld [vmem:[%s2 + $0x1b0] sm:$0xff]
  %v156 = vld [vmem:[%s2 + $0x1b8] sm:$0xff]
  %v157 = vld [vmem:[%s2 + $0x1c0] sm:$0xff]
  %v158 = vld [vmem:[%s2 + $0x1c8] sm:$0xff]
  %v159 = vld [vmem:[%s2 + $0x1d0] sm:$0xff]
  %v160 = vld [vmem:[%s2 + $0x1d8] sm:$0xff]
  %v161 = vld [vmem:[%s2 + $0x1e0] sm:$0xff]
  %v162 = vld [vmem:[%s2 + $0x1e8] sm:$0xff]
  %v163 = vld [vmem:[%s2 + $0x1f0] sm:$0xff]
  %v164 = vld [vmem:[%s2 + $0x1f8] sm:$0xff]
  %166 = vset.pattern.permute.xlu0 0
  %167 = vperm.xlu0 %166, %v101
  %v168 = vpop.permute.xlu0 %167
  %171 = vset.pattern.permute.xlu0 0
  %172 = vperm.xlu0 %171, %v102
  %v173 = vpop.permute.xlu0 %172
  %176 = vset.pattern.permute.xlu0 0
  %177 = vperm.xlu0 %176, %v103
  %v178 = vpop.permute.xlu0 %177
  %181 = vset.pattern.permute.xlu0 0
  %182 = vperm.xlu0 %181, %v104
  %v183 = vpop.permute.xlu0 %182
  %186 = vset.pattern.permute.xlu0 0
  %187 = vperm.xlu0 %186, %v105
  %v188 = vpop.permute.xlu0 %187
  %191 = vset.pattern.permute.xlu0 0
  %192 = vperm.xlu0 %191, %v106
  %v193 = vpop.permute.xlu0 %192
  %196 = vset.pattern.permute.xlu0 0
  %197 = vperm.xlu0 %196, %v107
  %v198 = vpop.permute.xlu0 %197
  %201 = vset.pattern.permute.xlu0 0
  %202 = vperm.xlu0 %201, %v108
  %v203 = vpop.permute.xlu0 %202
  %206 = vset.pattern.permute.xlu0 0
  %207 = vperm.xlu0 %206, %v109
  %v208 = vpop.permute.xlu0 %207
  %211 = vset.pattern.permute.xlu0 0
  %212 = vperm.xlu0 %211, %v110
  %v213 = vpop.permute.xlu0 %212
  %216 = vset.pattern.permute.xlu0 0
  %217 = vperm.xlu0 %216, %v111
  %v218 = vpop.permute.xlu0 %217
  %221 = vset.pattern.permute.xlu0 0
  %222 = vperm.xlu0 %221, %v112
  %v223 = vpop.permute.xlu0 %222
  %226 = vset.pattern.permute.xlu0 0
  %227 = vperm.xlu0 %226, %v113
  %v228 = vpop.permute.xlu0 %227
  %231 = vset.pattern.permute.xlu0 0
  %232 = vperm.xlu0 %231, %v114
  %v233 = vpop.permute.xlu0 %232
  %236 = vset.pattern.permute.xlu0 0
  %237 = vperm.xlu0 %236, %v115
  %v238 = vpop.permute.xlu0 %237
  %241 = vset.pattern.permute.xlu0 0
  %242 = vperm.xlu0 %241, %v116
  %v243 = vpop.permute.xlu0 %242
  %246 = vset.pattern.permute.xlu0 0
  %247 = vperm.xlu0 %246, %v117
  %v248 = vpop.permute.xlu0 %247
  %251 = vset.pattern.permute.xlu0 0
  %252 = vperm.xlu0 %251, %v118
  %v253 = vpop.permute.xlu0 %252
  %256 = vset.pattern.permute.xlu0 0
  %257 = vperm.xlu0 %256, %v119
  %v258 = vpop.permute.xlu0 %257
  %261 = vset.pattern.permute.xlu0 0
  %262 = vperm.xlu0 %261, %v120
  %v263 = vpop.permute.xlu0 %262
  %266 = vset.pattern.permute.xlu0 0
  %267 = vperm.xlu0 %266, %v121
  %v268 = vpop.permute.xlu0 %267
  %271 = vset.pattern.permute.xlu0 0
  %272 = vperm.xlu0 %271, %v122
  %v273 = vpop.permute.xlu0 %272
  %276 = vset.pattern.permute.xlu0 0
  %277 = vperm.xlu0 %276, %v123
  %v278 = vpop.permute.xlu0 %277
  %281 = vset.pattern.permute.xlu0 0
  %282 = vperm.xlu0 %281, %v124
  %v283 = vpop.permute.xlu0 %282
  %286 = vset.pattern.permute.xlu0 0
  %287 = vperm.xlu0 %286, %v125
  %v288 = vpop.permute.xlu0 %287
  %291 = vset.pattern.permute.xlu0 0
  %292 = vperm.xlu0 %291, %v126
  %v293 = vpop.permute.xlu0 %292
  %296 = vset.pattern.permute.xlu0 0
  %297 = vperm.xlu0 %296, %v127
  %v298 = vpop.permute.xlu0 %297
  %301 = vset.pattern.permute.xlu0 0
  %302 = vperm.xlu0 %301, %v128
  %v303 = vpop.permute.xlu0 %302
  %306 = vset.pattern.permute.xlu0 0
  %307 = vperm.xlu0 %306, %v129
  %v308 = vpop.permute.xlu0 %307
  %311 = vset.pattern.permute.xlu0 0
  %312 = vperm.xlu0 %311, %v130
  %v313 = vpop.permute.xlu0 %312
  %316 = vset.pattern.permute.xlu0 0
  %317 = vperm.xlu0 %316, %v131
  %v318 = vpop.permute.xlu0 %317
  %321 = vset.pattern.permute.xlu0 0
  %322 = vperm.xlu0 %321, %v132
  %v323 = vpop.permute.xlu0 %322
  %326 = vset.pattern.permute.xlu0 0
  %327 = vperm.xlu0 %326, %v133
  %v328 = vpop.permute.xlu0 %327
  %331 = vset.pattern.permute.xlu0 0
  %332 = vperm.xlu0 %331, %v134
  %v333 = vpop.permute.xlu0 %332
  %336 = vset.pattern.permute.xlu0 0
  %337 = vperm.xlu0 %336, %v135
  %v338 = vpop.permute.xlu0 %337
  %341 = vset.pattern.permute.xlu0 0
  %342 = vperm.xlu0 %341, %v136
  %v343 = vpop.permute.xlu0 %342
  %346 = vset.pattern.permute.xlu0 0
  %347 = vperm.xlu0 %346, %v137
  %v348 = vpop.permute.xlu0 %347
  %351 = vset.pattern.permute.xlu0 0
  %352 = vperm.xlu0 %351, %v138
  %v353 = vpop.permute.xlu0 %352
  %356 = vset.pattern.permute.xlu0 0
  %357 = vperm.xlu0 %356, %v139
  %v358 = vpop.permute.xlu0 %357
  %361 = vset.pattern.permute.xlu0 0
  %362 = vperm.xlu0 %361, %v140
  %v363 = vpop.permute.xlu0 %362
  %366 = vset.pattern.permute.xlu0 0
  %367 = vperm.xlu0 %366, %v141
  %v368 = vpop.permute.xlu0 %367
  %371 = vset.pattern.permute.xlu0 0
  %372 = vperm.xlu0 %371, %v142
  %v373 = vpop.permute.xlu0 %372
  %376 = vset.pattern.permute.xlu0 0
  %377 = vperm.xlu0 %376, %v143
  %v378 = vpop.permute.xlu0 %377
  %381 = vset.pattern.permute.xlu0 0
  %382 = vperm.xlu0 %381, %v144
  %v383 = vpop.permute.xlu0 %382
  %386 = vset.pattern.permute.xlu0 0
  %387 = vperm.xlu0 %386, %v145
  %v388 = vpop.permute.xlu0 %387
  %391 = vset.pattern.permute.xlu0 0
  %392 = vperm.xlu0 %391, %v146
  %v393 = vpop.permute.xlu0 %392
  %396 = vset.pattern.permute.xlu0 0
  %397 = vperm.xlu0 %396, %v147
  %v398 = vpop.permute.xlu0 %397
  %401 = vset.pattern.permute.xlu0 0
  %402 = vperm.xlu0 %401, %v148
  %v403 = vpop.permute.xlu0 %402
  %406 = vset.pattern.permute.xlu0 0
  %407 = vperm.xlu0 %406, %v149
  %v408 = vpop.permute.xlu0 %407
  %411 = vset.pattern.permute.xlu0 0
  %412 = vperm.xlu0 %411, %v150
  %v413 = vpop.permute.xlu0 %412
  %416 = vset.pattern.permute.xlu0 0
  %417 = vperm.xlu0 %416, %v151
  %v418 = vpop.permute.xlu0 %417
  %421 = vset.pattern.permute.xlu0 0
  %422 = vperm.xlu0 %421, %v152
  %v423 = vpop.permute.xlu0 %422
  %426 = vset.pattern.permute.xlu0 0
  %427 = vperm.xlu0 %426, %v153
  %v428 = vpop.permute.xlu0 %427
  %431 = vset.pattern.permute.xlu0 0
  %432 = vperm.xlu0 %431, %v154
  %v433 = vpop.permute.xlu0 %432
  %436 = vset.pattern.permute.xlu0 0
  %437 = vperm.xlu0 %436, %v155
  %v438 = vpop.permute.xlu0 %437
  %441 = vset.pattern.permute.xlu0 0
  %442 = vperm.xlu0 %441, %v156
  %v443 = vpop.permute.xlu0 %442
  %446 = vset.pattern.permute.xlu0 0
  %447 = vperm.xlu0 %446, %v157
  %v448 = vpop.permute.xlu0 %447
  %451 = vset.pattern.permute.xlu0 0
  %452 = vperm.xlu0 %451, %v158
  %v453 = vpop.permute.xlu0 %452
  %456 = vset.pattern.permute.xlu0 0
  %457 = vperm.xlu0 %456, %v159
  %v458 = vpop.permute.xlu0 %457
  %461 = vset.pattern.permute.xlu0 0
  %462 = vperm.xlu0 %461, %v160
  %v463 = vpop.permute.xlu0 %462
  %466 = vset.pattern.permute.xlu0 0
  %467 = vperm.xlu0 %466, %v161
  %v468 = vpop.permute.xlu0 %467
  %471 = vset.pattern.permute.xlu0 0
  %472 = vperm.xlu0 %471, %v162
  %v473 = vpop.permute.xlu0 %472
  %476 = vset.pattern.permute.xlu0 0
  %477 = vperm.xlu0 %476, %v163
  %v478 = vpop.permute.xlu0 %477
  %481 = vset.pattern.permute.xlu0 0
  %482 = vperm.xlu0 %481, %v164
  %v483 = vpop.permute.xlu0 %482
  %v549 = vunpack.c.l.b16 %v35
  %v550 = vunpack.c.l.b16 %v36
  %v551 = vunpack.c.l.b16 %v37
  %v552 = vunpack.c.l.b16 %v38
  %v553 = vunpack.c.l.b16 %v39
  %v554 = vunpack.c.l.b16 %v40
  %v555 = vunpack.c.l.b16 %v41
  %v556 = vunpack.c.l.b16 %v42
  %v557 = vunpack.c.l.b16 %v43
  %v558 = vunpack.c.l.b16 %v44
  %v559 = vunpack.c.l.b16 %v45
  %v560 = vunpack.c.l.b16 %v46
  %v561 = vunpack.c.l.b16 %v47
  %v562 = vunpack.c.l.b16 %v48
  %v563 = vunpack.c.l.b16 %v49
  %v564 = vunpack.c.l.b16 %v50
  %v565 = vunpack.c.l.b16 %v51
  %v566 = vunpack.c.l.b16 %v52
  %v567 = vunpack.c.l.b16 %v53
  %v568 = vunpack.c.l.b16 %v54
  %v569 = vunpack.c.l.b16 %v55
  %v570 = vunpack.c.l.b16 %v56
  %v571 = vunpack.c.l.b16 %v57
  %v572 = vunpack.c.l.b16 %v58
  %v573 = vunpack.c.l.b16 %v59
  %v574 = vunpack.c.l.b16 %v60
  %v575 = vunpack.c.l.b16 %v61
  %v576 = vunpack.c.l.b16 %v62
  %v577 = vunpack.c.l.b16 %v63
  %v578 = vunpack.c.l.b16 %v64
  %v579 = vunpack.c.l.b16 %v65
  %v580 = vunpack.c.l.b16 %v66
  %v581 = vunpack.c.l.b16 %v67
  %v582 = vunpack.c.l.b16 %v68
  %v583 = vunpack.c.l.b16 %v69
  %v584 = vunpack.c.l.b16 %v70
  %v585 = vunpack.c.l.b16 %v71
  %v586 = vunpack.c.l.b16 %v72
  %v587 = vunpack.c.l.b16 %v73
  %v588 = vunpack.c.l.b16 %v74
  %v589 = vunpack.c.l.b16 %v75
  %v590 = vunpack.c.l.b16 %v76
  %v591 = vunpack.c.l.b16 %v77
  %v592 = vunpack.c.l.b16 %v78
  %v593 = vunpack.c.l.b16 %v79
  %v594 = vunpack.c.l.b16 %v80
  %v595 = vunpack.c.l.b16 %v81
  %v596 = vunpack.c.l.b16 %v82
  %v597 = vunpack.c.l.b16 %v83
  %v598 = vunpack.c.l.b16 %v84
  %v599 = vunpack.c.l.b16 %v85
  %v600 = vunpack.c.l.b16 %v86
  %v601 = vunpack.c.l.b16 %v87
  %v602 = vunpack.c.l.b16 %v88
  %v603 = vunpack.c.l.b16 %v89
  %v604 = vunpack.c.l.b16 %v90
  %v605 = vunpack.c.l.b16 %v91
  %v606 = vunpack.c.l.b16 %v92
  %v607 = vunpack.c.l.b16 %v93
  %v608 = vunpack.c.l.b16 %v94
  %v609 = vunpack.c.l.b16 %v95
  %v610 = vunpack.c.l.b16 %v96
  %v611 = vunpack.c.l.b16 %v97
  %v612 = vunpack.c.l.b16 %v98
  %v613 = vpack.c.b16 %v550, %v549
  %v614 = vpack.c.b16 %v552, %v551
  %v615 = vpack.c.b16 %v554, %v553
  %v616 = vpack.c.b16 %v556, %v555
  %v617 = vpack.c.b16 %v558, %v557
  %v618 = vpack.c.b16 %v560, %v559
  %v619 = vpack.c.b16 %v562, %v561
  %v620 = vpack.c.b16 %v564, %v563
  %v621 = vpack.c.b16 %v566, %v565
  %v622 = vpack.c.b16 %v568, %v567
  %v623 = vpack.c.b16 %v570, %v569
  %v624 = vpack.c.b16 %v572, %v571
  %v625 = vpack.c.b16 %v574, %v573
  %v626 = vpack.c.b16 %v576, %v575
  %v627 = vpack.c.b16 %v578, %v577
  %v628 = vpack.c.b16 %v580, %v579
  %v629 = vpack.c.b16 %v582, %v581
  %v630 = vpack.c.b16 %v584, %v583
  %v631 = vpack.c.b16 %v586, %v585
  %v632 = vpack.c.b16 %v588, %v587
  %v633 = vpack.c.b16 %v590, %v589
  %v634 = vpack.c.b16 %v592, %v591
  %v635 = vpack.c.b16 %v594, %v593
  %v636 = vpack.c.b16 %v596, %v595
  %v637 = vpack.c.b16 %v598, %v597
  %v638 = vpack.c.b16 %v600, %v599
  %v639 = vpack.c.b16 %v602, %v601
  %v640 = vpack.c.b16 %v604, %v603
  %v641 = vpack.c.b16 %v606, %v605
  %v642 = vpack.c.b16 %v608, %v607
  %v643 = vpack.c.b16 %v610, %v609
  %v644 = vpack.c.b16 %v612, %v611
  %v647 = vunpack.c.l.b16 %v99
  %v648 = vunpack.c.l.b16 %v100
  %v649 = vpack.c.b16 %v648, %v647
  %vm651 = vcmask 130048
  %v653 = vsel %vm651, %v613, 0
  %v656 = vsel %vm651, %v614, 0
  %v659 = vsel %vm651, %v615, 0
  %v662 = vsel %vm651, %v616, 0
  %v665 = vsel %vm651, %v617, 0
  %v668 = vsel %vm651, %v618, 0
  %v671 = vsel %vm651, %v619, 0
  %v674 = vsel %vm651, %v620, 0
  %v677 = vsel %vm651, %v621, 0
  %v680 = vsel %vm651, %v622, 0
  %v683 = vsel %vm651, %v623, 0
  %v686 = vsel %vm651, %v624, 0
  %v689 = vsel %vm651, %v625, 0
  %v692 = vsel %vm651, %v626, 0
  %v695 = vsel %vm651, %v627, 0
  %v698 = vsel %vm651, %v628, 0
  %v701 = vsel %vm651, %v629, 0
  %v704 = vsel %vm651, %v630, 0
  %v707 = vsel %vm651, %v631, 0
  %v710 = vsel %vm651, %v632, 0
  %v713 = vsel %vm651, %v633, 0
  %v716 = vsel %vm651, %v634, 0
  %v719 = vsel %vm651, %v635, 0
  %v722 = vsel %vm651, %v636, 0
  %v725 = vsel %vm651, %v637, 0
  %v728 = vsel %vm651, %v638, 0
  %v731 = vsel %vm651, %v639, 0
  %v734 = vsel %vm651, %v640, 0
  %v737 = vsel %vm651, %v641, 0
  %v740 = vsel %vm651, %v642, 0
  %v743 = vsel %vm651, %v643, 0
  %v746 = vsel %vm651, %v644, 0
  %748 = vmatprep.subr.bf16.mxu0 0
  %749 = vmatpush1.bf16.msra.mxu0 %v649
  %750 = vmatprep.subr.bf16.mxu0 0
  %751 = vmatpush1.bf16.msra.mxu0 0
  %752 = vmatprep.subr.bf16.mxu0 0
  %753 = vmatpush1.bf16.msra.mxu0 0
  %754 = vmatprep.subr.bf16.mxu0 0
  %755 = vmatpush1.bf16.msra.mxu0 0
  %756 = vmatprep.subr.bf16.mxu0 0
  %757 = vmatpush1.bf16.msra.mxu0 0
  %758 = vmatprep.subr.bf16.mxu0 0
  %759 = vmatpush1.bf16.msra.mxu0 0
  %760 = vmatprep.subr.bf16.mxu0 0
  %761 = vmatpush1.bf16.msra.mxu0 0
  %762 = vmatprep.subr.bf16.mxu0 0
  %763 = vmatpush1.bf16.msra.mxu0 0
  %764 = vmatprep.subr.bf16.mxu0 0
  %765 = vmatpush1.bf16.msra.mxu0 0
  %766 = vmatprep.subr.bf16.mxu0 0
  %767 = vmatpush1.bf16.msra.mxu0 0
  %768 = vmatprep.subr.bf16.mxu0 0
  %769 = vmatpush1.bf16.msra.mxu0 0
  %770 = vmatprep.subr.bf16.mxu0 0
  %771 = vmatpush1.bf16.msra.mxu0 0
  %772 = vmatprep.subr.bf16.mxu0 0
  %773 = vmatpush1.bf16.msra.mxu0 0
  %774 = vmatprep.subr.bf16.mxu0 0
  %775 = vmatpush1.bf16.msra.mxu0 0
  %776 = vmatprep.subr.bf16.mxu0 0
  %777 = vmatpush1.bf16.msra.mxu0 0
  %778 = vmatprep.subr.bf16.mxu0 0
  %779 = vmatpush1.bf16.msra.mxu0 0
  %780 = vmatprep.mubr.bf16.mxu0 0
  %781 = vmatmul.mubr.bf16.gmra.mrb[0].mxu0 %v653
  %v782 = vpop.f32.mrb[0].mxu0
  %v783 = vadd.f32 %v168, %v782
  %v784 = vpop.f32.mrb[0].mxu0
  %v785 = vpop.f32.mrb[0].mxu0
  %v786 = vadd.f32 %v173, %v785
  %v787 = vpop.f32.mrb[0].mxu0
  %788 = vmatprep.mubr.bf16.mxu0 0
  %789 = vmatmul.mubr.bf16.gmra.mrb[0].mxu0 %v656
  %v790 = vpop.f32.mrb[0].mxu0
  %v791 = vadd.f32 %v178, %v790
  %v792 = vpop.f32.mrb[0].mxu0
  %v793 = vpop.f32.mrb[0].mxu0
  %v794 = vadd.f32 %v183, %v793
  %v795 = vpop.f32.mrb[0].mxu0
  %796 = vmatprep.mubr.bf16.mxu0 0
  %797 = vmatmul.mubr.bf16.gmra.mrb[0].mxu0 %v659
  %v798 = vpop.f32.mrb[0].mxu0
  %v799 = vadd.f32 %v188, %v798
  %v800 = vpop.f32.mrb[0].mxu0
  %v801 = vpop.f32.mrb[0].mxu0
  %v802 = vadd.f32 %v193, %v801
  %v803 = vpop.f32.mrb[0].mxu0
  %804 = vmatprep.mubr.bf16.mxu0 0
  %805 = vmatmul.mubr.bf16.gmra.mrb[0].mxu0 %v662
  %v806 = vpop.f32.mrb[0].mxu0
  %v807 = vadd.f32 %v198, %v806
  %v808 = vpop.f32.mrb[0].mxu0
  %v809 = vpop.f32.mrb[0].mxu0
  %v810 = vadd.f32 %v203, %v809
  %v811 = vpop.f32.mrb[0].mxu0
  %812 = vmatprep.mubr.bf16.mxu0 0
  %813 = vmatmul.mubr.bf16.gmra.mrb[0].mxu0 %v665
  %v814 = vpop.f32.mrb[0].mxu0
  %v815 = vadd.f32 %v208, %v814
  %v816 = vpop.f32.mrb[0].mxu0
  %v817 = vpop.f32.mrb[0].mxu0
  %v818 = vadd.f32 %v213, %v817
  %v819 = vpop.f32.mrb[0].mxu0
  %820 = vmatprep.mubr.bf16.mxu0 0
  %821 = vmatmul.mubr.bf16.gmra.mrb[0].mxu0 %v668
  %v822 = vpop.f32.mrb[0].mxu0
  %v823 = vadd.f32 %v218, %v822
  %v824 = vpop.f32.mrb[0].mxu0
  %v825 = vpop.f32.mrb[0].mxu0
  %v826 = vadd.f32 %v223, %v825
  %v827 = vpop.f32.mrb[0].mxu0
  %828 = vmatprep.mubr.bf16.mxu0 0
  %829 = vmatmul.mubr.bf16.gmra.mrb[0].mxu0 %v671
  %v830 = vpop.f32.mrb[0].mxu0
  %v831 = vadd.f32 %v228, %v830
  %v832 = vpop.f32.mrb[0].mxu0
  %v833 = vpop.f32.mrb[0].mxu0
  %v834 = vadd.f32 %v233, %v833
  %v835 = vpop.f32.mrb[0].mxu0
  %836 = vmatprep.mubr.bf16.mxu0 0
  %837 = vmatmul.mubr.bf16.gmra.mrb[0].mxu0 %v674
  %v838 = vpop.f32.mrb[0].mxu0
  %v839 = vadd.f32 %v238, %v838
  %v840 = vpop.f32.mrb[0].mxu0
  %v841 = vpop.f32.mrb[0].mxu0
  %v842 = vadd.f32 %v243, %v841
  %v843 = vpop.f32.mrb[0].mxu0
  %844 = vmatprep.mubr.bf16.mxu0 0
  %845 = vmatmul.mubr.bf16.gmra.mrb[0].mxu0 %v677
  %v846 = vpop.f32.mrb[0].mxu0
  %v847 = vadd.f32 %v248, %v846
  %v848 = vpop.f32.mrb[0].mxu0
  %v849 = vpop.f32.mrb[0].mxu0
  %v850 = vadd.f32 %v253, %v849
  %v851 = vpop.f32.mrb[0].mxu0
  %852 = vmatprep.mubr.bf16.mxu0 0
  %853 = vmatmul.mubr.bf16.gmra.mrb[0].mxu0 %v680
  %v854 = vpop.f32.mrb[0].mxu0
  %v855 = vadd.f32 %v258, %v854
  %v856 = vpop.f32.mrb[0].mxu0
  %v857 = vpop.f32.mrb[0].mxu0
  %v858 = vadd.f32 %v263, %v857
  %v859 = vpop.f32.mrb[0].mxu0
  %860 = vmatprep.mubr.bf16.mxu0 0
  %861 = vmatmul.mubr.bf16.gmra.mrb[0].mxu0 %v683
  %v862 = vpop.f32.mrb[0].mxu0
  %v863 = vadd.f32 %v268, %v862
  %v864 = vpop.f32.mrb[0].mxu0
  %v865 = vpop.f32.mrb[0].mxu0
  %v866 = vadd.f32 %v273, %v865
  %v867 = vpop.f32.mrb[0].mxu0
  %868 = vmatprep.mubr.bf16.mxu0 0
  %869 = vmatmul.mubr.bf16.gmra.mrb[0].mxu0 %v686
  %v870 = vpop.f32.mrb[0].mxu0
  %v871 = vadd.f32 %v278, %v870
  %v872 = vpop.f32.mrb[0].mxu0
  %v873 = vpop.f32.mrb[0].mxu0
  %v874 = vadd.f32 %v283, %v873
  %v875 = vpop.f32.mrb[0].mxu0
  %876 = vmatprep.mubr.bf16.mxu0 0
  %877 = vmatmul.mubr.bf16.gmra.mrb[0].mxu0 %v689
  %v878 = vpop.f32.mrb[0].mxu0
  %v879 = vadd.f32 %v288, %v878
  %v880 = vpop.f32.mrb[0].mxu0
  %v881 = vpop.f32.mrb[0].mxu0
  %v882 = vadd.f32 %v293, %v881
  %v883 = vpop.f32.mrb[0].mxu0
  %884 = vmatprep.mubr.bf16.mxu0 0
  %885 = vmatmul.mubr.bf16.gmra.mrb[0].mxu0 %v692
  %v886 = vpop.f32.mrb[0].mxu0
  %v887 = vadd.f32 %v298, %v886
  %v888 = vpop.f32.mrb[0].mxu0
  %v889 = vpop.f32.mrb[0].mxu0
  %v890 = vadd.f32 %v303, %v889
  %v891 = vpop.f32.mrb[0].mxu0
  %892 = vmatprep.mubr.bf16.mxu0 0
  %893 = vmatmul.mubr.bf16.gmra.mrb[0].mxu0 %v695
  %v894 = vpop.f32.mrb[0].mxu0
  %v895 = vadd.f32 %v308, %v894
  %v896 = vpop.f32.mrb[0].mxu0
  %v897 = vpop.f32.mrb[0].mxu0
  %v898 = vadd.f32 %v313, %v897
  %v899 = vpop.f32.mrb[0].mxu0
  %900 = vmatprep.mubr.bf16.mxu0 0
  %901 = vmatmul.mubr.bf16.gmra.mrb[0].mxu0 %v698
  %v902 = vpop.f32.mrb[0].mxu0
  %v903 = vadd.f32 %v318, %v902
  %v904 = vpop.f32.mrb[0].mxu0
  %v905 = vpop.f32.mrb[0].mxu0
  %v906 = vadd.f32 %v323, %v905
  %v907 = vpop.f32.mrb[0].mxu0
  %908 = vmatprep.mubr.bf16.mxu0 0
  %909 = vmatmul.mubr.bf16.gmra.mrb[0].mxu0 %v701
  %v910 = vpop.f32.mrb[0].mxu0
  %v911 = vadd.f32 %v328, %v910
  %v912 = vpop.f32.mrb[0].mxu0
  %v913 = vpop.f32.mrb[0].mxu0
  %v914 = vadd.f32 %v333, %v913
  %v915 = vpop.f32.mrb[0].mxu0
  %916 = vmatprep.mubr.bf16.mxu0 0
  %917 = vmatmul.mubr.bf16.gmra.mrb[0].mxu0 %v704
  %v918 = vpop.f32.mrb[0].mxu0
  %v919 = vadd.f32 %v338, %v918
  %v920 = vpop.f32.mrb[0].mxu0
  %v921 = vpop.f32.mrb[0].mxu0
  %v922 = vadd.f32 %v343, %v921
  %v923 = vpop.f32.mrb[0].mxu0
  %924 = vmatprep.mubr.bf16.mxu0 0
  %925 = vmatmul.mubr.bf16.gmra.mrb[0].mxu0 %v707
  %v926 = vpop.f32.mrb[0].mxu0
  %v927 = vadd.f32 %v348, %v926
  %v928 = vpop.f32.mrb[0].mxu0
  %v929 = vpop.f32.mrb[0].mxu0
  %v930 = vadd.f32 %v353, %v929
  %v931 = vpop.f32.mrb[0].mxu0
  %932 = vmatprep.mubr.bf16.mxu0 0
  %933 = vmatmul.mubr.bf16.gmra.mrb[0].mxu0 %v710
  %v934 = vpop.f32.mrb[0].mxu0
  %v935 = vadd.f32 %v358, %v934
  %v936 = vpop.f32.mrb[0].mxu0
  %v937 = vpop.f32.mrb[0].mxu0
  %v938 = vadd.f32 %v363, %v937
  %v939 = vpop.f32.mrb[0].mxu0
  %940 = vmatprep.mubr.bf16.mxu0 0
  %941 = vmatmul.mubr.bf16.gmra.mrb[0].mxu0 %v713
  %v942 = vpop.f32.mrb[0].mxu0
  %v943 = vadd.f32 %v368, %v942
  %v944 = vpop.f32.mrb[0].mxu0
  %v945 = vpop.f32.mrb[0].mxu0
  %v946 = vadd.f32 %v373, %v945
  %v947 = vpop.f32.mrb[0].mxu0
  %948 = vmatprep.mubr.bf16.mxu0 0
  %949 = vmatmul.mubr.bf16.gmra.mrb[0].mxu0 %v716
  %v950 = vpop.f32.mrb[0].mxu0
  %v951 = vadd.f32 %v378, %v950
  %v952 = vpop.f32.mrb[0].mxu0
  %v953 = vpop.f32.mrb[0].mxu0
  %v954 = vadd.f32 %v383, %v953
  %v955 = vpop.f32.mrb[0].mxu0
  %956 = vmatprep.mubr.bf16.mxu0 0
  %957 = vmatmul.mubr.bf16.gmra.mrb[0].mxu0 %v719
  %v958 = vpop.f32.mrb[0].mxu0
  %v959 = vadd.f32 %v388, %v958
  %v960 = vpop.f32.mrb[0].mxu0
  %v961 = vpop.f32.mrb[0].mxu0
  %v962 = vadd.f32 %v393, %v961
  %v963 = vpop.f32.mrb[0].mxu0
  %964 = vmatprep.mubr.bf16.mxu0 0
  %965 = vmatmul.mubr.bf16.gmra.mrb[0].mxu0 %v722
  %v966 = vpop.f32.mrb[0].mxu0
  %v967 = vadd.f32 %v398, %v966
  %v968 = vpop.f32.mrb[0].mxu0
  %v969 = vpop.f32.mrb[0].mxu0
  %v970 = vadd.f32 %v403, %v969
  %v971 = vpop.f32.mrb[0].mxu0
  %972 = vmatprep.mubr.bf16.mxu0 0
  %973 = vmatmul.mubr.bf16.gmra.mrb[0].mxu0 %v725
  %v974 = vpop.f32.mrb[0].mxu0
  %v975 = vadd.f32 %v408, %v974
  %v976 = vpop.f32.mrb[0].mxu0
  %v977 = vpop.f32.mrb[0].mxu0
  %v978 = vadd.f32 %v413, %v977
  %v979 = vpop.f32.mrb[0].mxu0
  %980 = vmatprep.mubr.bf16.mxu0 0
  %981 = vmatmul.mubr.bf16.gmra.mrb[0].mxu0 %v728
  %v982 = vpop.f32.mrb[0].mxu0
  %v983 = vadd.f32 %v418, %v982
  %v984 = vpop.f32.mrb[0].mxu0
  %v985 = vpop.f32.mrb[0].mxu0
  %v986 = vadd.f32 %v423, %v985
  %v987 = vpop.f32.mrb[0].mxu0
  %988 = vmatprep.mubr.bf16.mxu0 0
  %989 = vmatmul.mubr.bf16.gmra.mrb[0].mxu0 %v731
  %v990 = vpop.f32.mrb[0].mxu0
  %v991 = vadd.f32 %v428, %v990
  %v992 = vpop.f32.mrb[0].mxu0
  %v993 = vpop.f32.mrb[0].mxu0
  %v994 = vadd.f32 %v433, %v993
  %v995 = vpop.f32.mrb[0].mxu0
  %996 = vmatprep.mubr.bf16.mxu0 0
  %997 = vmatmul.mubr.bf16.gmra.mrb[0].mxu0 %v734
  %v998 = vpop.f32.mrb[0].mxu0
  %v999 = vadd.f32 %v438, %v998
  %v1000 = vpop.f32.mrb[0].mxu0
  %v1001 = vpop.f32.mrb[0].mxu0
  %v1002 = vadd.f32 %v443, %v1001
  %v1003 = vpop.f32.mrb[0].mxu0
  %1004 = vmatprep.mubr.bf16.mxu0 0
  %1005 = vmatmul.mubr.bf16.gmra.mrb[0].mxu0 %v737
  %v1006 = vpop.f32.mrb[0].mxu0
  %v1007 = vadd.f32 %v448, %v1006
  %v1008 = vpop.f32.mrb[0].mxu0
  %v1009 = vpop.f32.mrb[0].mxu0
  %v1010 = vadd.f32 %v453, %v1009
  %v1011 = vpop.f32.mrb[0].mxu0
  %1012 = vmatprep.mubr.bf16.mxu0 0
  %1013 = vmatmul.mubr.bf16.gmra.mrb[0].mxu0 %v740
  %v1014 = vpop.f32.mrb[0].mxu0
  %v1015 = vadd.f32 %v458, %v1014
  %v1016 = vpop.f32.mrb[0].mxu0
  %v1017 = vpop.f32.mrb[0].mxu0
  %v1018 = vadd.f32 %v463, %v1017
  %v1019 = vpop.f32.mrb[0].mxu0
  %1020 = vmatprep.mubr.bf16.mxu0 0
  %1021 = vmatmul.mubr.bf16.gmra.mrb[0].mxu0 %v743
  %v1022 = vpop.f32.mrb[0].mxu0
  %v1023 = vadd.f32 %v468, %v1022
  %v1024 = vpop.f32.mrb[0].mxu0
  %v1025 = vpop.f32.mrb[0].mxu0
  %v1026 = vadd.f32 %v473, %v1025
  %v1027 = vpop.f32.mrb[0].mxu0
  %1028 = vmatprep.mubr.bf16.mxu0 0
  %1029 = vmatmul.mubr.bf16.gmra.mrb[0].mxu0 %v746
  %v1030 = vpop.f32.mrb[0].mxu0
  %v1031 = vadd.f32 %v478, %v1030
  %v1032 = vpop.f32.mrb[0].mxu0
  %v1033 = vpop.f32.mrb[0].mxu0
  %v1034 = vadd.f32 %v483, %v1033
  %v1035 = vpop.f32.mrb[0].mxu0
  %1036 = vdwg.mxu0
  %v1037 = vmax.f32 %v783, 0.0
  %v1038 = vmax.f32 %v786, 0.0
  %v1039 = vmax.f32 %v791, 0.0
  %v1040 = vmax.f32 %v794, 0.0
  %v1041 = vmax.f32 %v799, 0.0
  %v1042 = vmax.f32 %v802, 0.0
  %v1043 = vmax.f32 %v807, 0.0
  %v1044 = vmax.f32 %v810, 0.0
  %v1045 = vmax.f32 %v815, 0.0
  %v1046 = vmax.f32 %v818, 0.0
  %v1047 = vmax.f32 %v823, 0.0
  %v1048 = vmax.f32 %v826, 0.0
  %v1049 = vmax.f32 %v831, 0.0
  %v1050 = vmax.f32 %v834, 0.0
  %v1051 = vmax.f32 %v839, 0.0
  %v1052 = vmax.f32 %v842, 0.0
  %v1053 = vmax.f32 %v847, 0.0
  %v1054 = vmax.f32 %v850, 0.0
  %v1055 = vmax.f32 %v855, 0.0
  %v1056 = vmax.f32 %v858, 0.0
  %v1057 = vmax.f32 %v863, 0.0
  %v1058 = vmax.f32 %v866, 0.0
  %v1059 = vmax.f32 %v871, 0.0
  %v1060 = vmax.f32 %v874, 0.0
  %v1061 = vmax.f32 %v879, 0.0
  %v1062 = vmax.f32 %v882, 0.0
  %v1063 = vmax.f32 %v887, 0.0
  %v1064 = vmax.f32 %v890, 0.0
  %v1065 = vmax.f32 %v895, 0.0
  %v1066 = vmax.f32 %v898, 0.0
  %v1067 = vmax.f32 %v903, 0.0
  %v1068 = vmax.f32 %v906, 0.0
  %v1069 = vmax.f32 %v911, 0.0
  %v1070 = vmax.f32 %v914, 0.0
  %v1071 = vmax.f32 %v919, 0.0
  %v1072 = vmax.f32 %v922, 0.0
  %v1073 = vmax.f32 %v927, 0.0
  %v1074 = vmax.f32 %v930, 0.0
  %v1075 = vmax.f32 %v935, 0.0
  %v1076 = vmax.f32 %v938, 0.0
  %v1077 = vmax.f32 %v943, 0.0
  %v1078 = vmax.f32 %v946, 0.0
  %v1079 = vmax.f32 %v951, 0.0
  %v1080 = vmax.f32 %v954, 0.0
  %v1081 = vmax.f32 %v959, 0.0
  %v1082 = vmax.f32 %v962, 0.0
  %v1083 = vmax.f32 %v967, 0.0
  %v1084 = vmax.f32 %v970, 0.0
  %v1085 = vmax.f32 %v975, 0.0
  %v1086 = vmax.f32 %v978, 0.0
  %v1087 = vmax.f32 %v983, 0.0
  %v1088 = vmax.f32 %v986, 0.0
  %v1089 = vmax.f32 %v991, 0.0
  %v1090 = vmax.f32 %v994, 0.0
  %v1091 = vmax.f32 %v999, 0.0
  %v1092 = vmax.f32 %v1002, 0.0
  %v1093 = vmax.f32 %v1007, 0.0
  %v1094 = vmax.f32 %v1010, 0.0
  %v1095 = vmax.f32 %v1015, 0.0
  %v1096 = vmax.f32 %v1018, 0.0
  %v1097 = vmax.f32 %v1023, 0.0
  %v1098 = vmax.f32 %v1026, 0.0
  %v1099 = vmax.f32 %v1031, 0.0
  %v1100 = vmax.f32 %v1034, 0.0
  %v1101 = vld [vmem:[%s3] sm:$0xff]
  %v1102 = vld [vmem:[%s3 + $0x8] sm:$0xff]
  %v1103 = vld [vmem:[%s3 + $0x10] sm:$0xff]
  %v1104 = vld [vmem:[%s3 + $0x18] sm:$0xff]
  %v1105 = vld [vmem:[%s3 + $0x20] sm:$0xff]
  %v1106 = vld [vmem:[%s3 + $0x28] sm:$0xff]
  %v1107 = vld [vmem:[%s3 + $0x30] sm:$0xff]
  %v1108 = vld [vmem:[%s3 + $0x38] sm:$0xff]
  %v1109 = vld [vmem:[%s3 + $0x40] sm:$0xff]
  %v1110 = vld [vmem:[%s3 + $0x48] sm:$0xff]
  %v1111 = vld [vmem:[%s3 + $0x50] sm:$0xff]
  %v1112 = vld [vmem:[%s3 + $0x58] sm:$0xff]
  %v1113 = vld [vmem:[%s3 + $0x60] sm:$0xff]
  %v1114 = vld [vmem:[%s3 + $0x68] sm:$0xff]
  %v1115 = vld [vmem:[%s3 + $0x70] sm:$0xff]
  %v1116 = vld [vmem:[%s3 + $0x78] sm:$0xff]
  %v1117 = vld [vmem:[%s3 + $0x80] sm:$0xff]
  %v1118 = vld [vmem:[%s3 + $0x88] sm:$0xff]
  %v1119 = vld [vmem:[%s3 + $0x90] sm:$0xff]
  %v1120 = vld [vmem:[%s3 + $0x98] sm:$0xff]
  %v1121 = vld [vmem:[%s3 + $0xa0] sm:$0xff]
  %v1122 = vld [vmem:[%s3 + $0xa8] sm:$0xff]
  %v1123 = vld [vmem:[%s3 + $0xb0] sm:$0xff]
  %v1124 = vld [vmem:[%s3 + $0xb8] sm:$0xff]
  %v1125 = vld [vmem:[%s3 + $0xc0] sm:$0xff]
  %v1126 = vld [vmem:[%s3 + $0xc8] sm:$0xff]
  %v1127 = vld [vmem:[%s3 + $0xd0] sm:$0xff]
  %v1128 = vld [vmem:[%s3 + $0xd8] sm:$0xff]
  %v1129 = vld [vmem:[%s3 + $0xe0] sm:$0xff]
  %v1130 = vld [vmem:[%s3 + $0xe8] sm:$0xff]
  %v1131 = vld [vmem:[%s3 + $0xf0] sm:$0xff]
  %v1132 = vld [vmem:[%s3 + $0xf8] sm:$0xff]
  %v1133 = vld [vmem:[%s3 + $0x100] sm:$0xff]
  %v1134 = vld [vmem:[%s3 + $0x108] sm:$0xff]
  %v1135 = vld [vmem:[%s3 + $0x110] sm:$0xff]
  %v1136 = vld [vmem:[%s3 + $0x118] sm:$0xff]
  %v1137 = vld [vmem:[%s3 + $0x120] sm:$0xff]
  %v1138 = vld [vmem:[%s3 + $0x128] sm:$0xff]
  %v1139 = vld [vmem:[%s3 + $0x130] sm:$0xff]
  %v1140 = vld [vmem:[%s3 + $0x138] sm:$0xff]
  %v1141 = vld [vmem:[%s3 + $0x140] sm:$0xff]
  %v1142 = vld [vmem:[%s3 + $0x148] sm:$0xff]
  %v1143 = vld [vmem:[%s3 + $0x150] sm:$0xff]
  %v1144 = vld [vmem:[%s3 + $0x158] sm:$0xff]
  %v1145 = vld [vmem:[%s3 + $0x160] sm:$0xff]
  %v1146 = vld [vmem:[%s3 + $0x168] sm:$0xff]
  %v1147 = vld [vmem:[%s3 + $0x170] sm:$0xff]
  %v1148 = vld [vmem:[%s3 + $0x178] sm:$0xff]
  %v1149 = vld [vmem:[%s3 + $0x180] sm:$0xff]
  %v1150 = vld [vmem:[%s3 + $0x188] sm:$0xff]
  %v1151 = vld [vmem:[%s3 + $0x190] sm:$0xff]
  %v1152 = vld [vmem:[%s3 + $0x198] sm:$0xff]
  %v1153 = vld [vmem:[%s3 + $0x1a0] sm:$0xff]
  %v1154 = vld [vmem:[%s3 + $0x1a8] sm:$0xff]
  %v1155 = vld [vmem:[%s3 + $0x1b0] sm:$0xff]
  %v1156 = vld [vmem:[%s3 + $0x1b8] sm:$0xff]
  %v1157 = vld [vmem:[%s3 + $0x1c0] sm:$0xff]
  %v1158 = vld [vmem:[%s3 + $0x1c8] sm:$0xff]
  %v1159 = vld [vmem:[%s3 + $0x1d0] sm:$0xff]
  %v1160 = vld [vmem:[%s3 + $0x1d8] sm:$0xff]
  %v1161 = vld [vmem:[%s3 + $0x1e0] sm:$0xff]
  %v1162 = vld [vmem:[%s3 + $0x1e8] sm:$0xff]
  %v1163 = vld [vmem:[%s3 + $0x1f0] sm:$0xff]
  %v1164 = vld [vmem:[%s3 + $0x1f8] sm:$0xff]
  %v1165 = vpack.c.bf16 %v1038, %v1037
  %v1166 = vpack.c.bf16 %v1040, %v1039
  %v1167 = vpack.c.bf16 %v1042, %v1041
  %v1168 = vpack.c.bf16 %v1044, %v1043
  %v1169 = vpack.c.bf16 %v1046, %v1045
  %v1170 = vpack.c.bf16 %v1048, %v1047
  %v1171 = vpack.c.bf16 %v1050, %v1049
  %v1172 = vpack.c.bf16 %v1052, %v1051
  %v1173 = vpack.c.bf16 %v1054, %v1053
  %v1174 = vpack.c.bf16 %v1056, %v1055
  %v1175 = vpack.c.bf16 %v1058, %v1057
  %v1176 = vpack.c.bf16 %v1060, %v1059
  %v1177 = vpack.c.bf16 %v1062, %v1061
  %v1178 = vpack.c.bf16 %v1064, %v1063
  %v1179 = vpack.c.bf16 %v1066, %v1065
  %v1180 = vpack.c.bf16 %v1068, %v1067
  %v1181 = vpack.c.bf16 %v1070, %v1069
  %v1182 = vpack.c.bf16 %v1072, %v1071
  %v1183 = vpack.c.bf16 %v1074, %v1073
  %v1184 = vpack.c.bf16 %v1076, %v1075
  %v1185 = vpack.c.bf16 %v1078, %v1077
  %v1186 = vpack.c.bf16 %v1080, %v1079
  %v1187 = vpack.c.bf16 %v1082, %v1081
  %v1188 = vpack.c.bf16 %v1084, %v1083
  %v1189 = vpack.c.bf16 %v1086, %v1085
  %v1190 = vpack.c.bf16 %v1088, %v1087
  %v1191 = vpack.c.bf16 %v1090, %v1089
  %v1192 = vpack.c.bf16 %v1092, %v1091
  %v1193 = vpack.c.bf16 %v1094, %v1093
  %v1194 = vpack.c.bf16 %v1096, %v1095
  %v1195 = vpack.c.bf16 %v1098, %v1097
  %v1196 = vpack.c.bf16 %v1100, %v1099
  %v1197 = vld [vmem:[%s4] sm:$0xff]
  %v1198 = vld [vmem:[%s4 + $0x8] sm:$0xff]
  %v1199 = vld [vmem:[%s4 + $0x10] sm:$0xff]
  %v1200 = vld [vmem:[%s4 + $0x18] sm:$0xff]
  %v1201 = vld [vmem:[%s4 + $0x20] sm:$0xff]
  %v1202 = vld [vmem:[%s4 + $0x28] sm:$0xff]
  %v1203 = vld [vmem:[%s4 + $0x30] sm:$0xff]
  %v1204 = vld [vmem:[%s4 + $0x38] sm:$0xff]
  %v1205 = vld [vmem:[%s4 + $0x40] sm:$0xff]
  %v1206 = vld [vmem:[%s4 + $0x48] sm:$0xff]
  %v1207 = vld [vmem:[%s4 + $0x50] sm:$0xff]
  %v1208 = vld [vmem:[%s4 + $0x58] sm:$0xff]
  %v1209 = vld [vmem:[%s4 + $0x60] sm:$0xff]
  %v1210 = vld [vmem:[%s4 + $0x68] sm:$0xff]
  %v1211 = vld [vmem:[%s4 + $0x70] sm:$0xff]
  %v1212 = vld [vmem:[%s4 + $0x78] sm:$0xff]
  %v1213 = vld [vmem:[%s4 + $0x80] sm:$0xff]
  %v1214 = vld [vmem:[%s4 + $0x88] sm:$0xff]
  %v1215 = vld [vmem:[%s4 + $0x90] sm:$0xff]
  %v1216 = vld [vmem:[%s4 + $0x98] sm:$0xff]
  %v1217 = vld [vmem:[%s4 + $0xa0] sm:$0xff]
  %v1218 = vld [vmem:[%s4 + $0xa8] sm:$0xff]
  %v1219 = vld [vmem:[%s4 + $0xb0] sm:$0xff]
  %v1220 = vld [vmem:[%s4 + $0xb8] sm:$0xff]
  %v1221 = vld [vmem:[%s4 + $0xc0] sm:$0xff]
  %v1222 = vld [vmem:[%s4 + $0xc8] sm:$0xff]
  %v1223 = vld [vmem:[%s4 + $0xd0] sm:$0xff]
  %v1224 = vld [vmem:[%s4 + $0xd8] sm:$0xff]
  %v1225 = vld [vmem:[%s4 + $0xe0] sm:$0xff]
  %v1226 = vld [vmem:[%s4 + $0xe8] sm:$0xff]
  %v1227 = vld [vmem:[%s4 + $0xf0] sm:$0xff]
  %v1228 = vld [vmem:[%s4 + $0xf8] sm:$0xff]
  %1230 = vset.pattern.permute.xlu0 0
  %1231 = vperm.xlu0 %1230, %v1197
  %v1232 = vpop.permute.xlu0 %1231
  %1235 = vset.pattern.permute.xlu0 0
  %1236 = vperm.xlu0 %1235, %v1198
  %v1237 = vpop.permute.xlu0 %1236
  %1240 = vset.pattern.permute.xlu0 0
  %1241 = vperm.xlu0 %1240, %v1199
  %v1242 = vpop.permute.xlu0 %1241
  %1245 = vset.pattern.permute.xlu0 0
  %1246 = vperm.xlu0 %1245, %v1200
  %v1247 = vpop.permute.xlu0 %1246
  %1250 = vset.pattern.permute.xlu0 0
  %1251 = vperm.xlu0 %1250, %v1201
  %v1252 = vpop.permute.xlu0 %1251
  %1255 = vset.pattern.permute.xlu0 0
  %1256 = vperm.xlu0 %1255, %v1202
  %v1257 = vpop.permute.xlu0 %1256
  %1260 = vset.pattern.permute.xlu0 0
  %1261 = vperm.xlu0 %1260, %v1203
  %v1262 = vpop.permute.xlu0 %1261
  %1265 = vset.pattern.permute.xlu0 0
  %1266 = vperm.xlu0 %1265, %v1204
  %v1267 = vpop.permute.xlu0 %1266
  %1270 = vset.pattern.permute.xlu0 0
  %1271 = vperm.xlu0 %1270, %v1205
  %v1272 = vpop.permute.xlu0 %1271
  %1275 = vset.pattern.permute.xlu0 0
  %1276 = vperm.xlu0 %1275, %v1206
  %v1277 = vpop.permute.xlu0 %1276
  %1280 = vset.pattern.permute.xlu0 0
  %1281 = vperm.xlu0 %1280, %v1207
  %v1282 = vpop.permute.xlu0 %1281
  %1285 = vset.pattern.permute.xlu0 0
  %1286 = vperm.xlu0 %1285, %v1208
  %v1287 = vpop.permute.xlu0 %1286
  %1290 = vset.pattern.permute.xlu0 0
  %1291 = vperm.xlu0 %1290, %v1209
  %v1292 = vpop.permute.xlu0 %1291
  %1295 = vset.pattern.permute.xlu0 0
  %1296 = vperm.xlu0 %1295, %v1210
  %v1297 = vpop.permute.xlu0 %1296
  %1300 = vset.pattern.permute.xlu0 0
  %1301 = vperm.xlu0 %1300, %v1211
  %v1302 = vpop.permute.xlu0 %1301
  %1305 = vset.pattern.permute.xlu0 0
  %1306 = vperm.xlu0 %1305, %v1212
  %v1307 = vpop.permute.xlu0 %1306
  %1310 = vset.pattern.permute.xlu0 0
  %1311 = vperm.xlu0 %1310, %v1213
  %v1312 = vpop.permute.xlu0 %1311
  %1315 = vset.pattern.permute.xlu0 0
  %1316 = vperm.xlu0 %1315, %v1214
  %v1317 = vpop.permute.xlu0 %1316
  %1320 = vset.pattern.permute.xlu0 0
  %1321 = vperm.xlu0 %1320, %v1215
  %v1322 = vpop.permute.xlu0 %1321
  %1325 = vset.pattern.permute.xlu0 0
  %1326 = vperm.xlu0 %1325, %v1216
  %v1327 = vpop.permute.xlu0 %1326
  %1330 = vset.pattern.permute.xlu0 0
  %1331 = vperm.xlu0 %1330, %v1217
  %v1332 = vpop.permute.xlu0 %1331
  %1335 = vset.pattern.permute.xlu0 0
  %1336 = vperm.xlu0 %1335, %v1218
  %v1337 = vpop.permute.xlu0 %1336
  %1340 = vset.pattern.permute.xlu0 0
  %1341 = vperm.xlu0 %1340, %v1219
  %v1342 = vpop.permute.xlu0 %1341
  %1345 = vset.pattern.permute.xlu0 0
  %1346 = vperm.xlu0 %1345, %v1220
  %v1347 = vpop.permute.xlu0 %1346
  %1350 = vset.pattern.permute.xlu0 0
  %1351 = vperm.xlu0 %1350, %v1221
  %v1352 = vpop.permute.xlu0 %1351
  %1355 = vset.pattern.permute.xlu0 0
  %1356 = vperm.xlu0 %1355, %v1222
  %v1357 = vpop.permute.xlu0 %1356
  %1360 = vset.pattern.permute.xlu0 0
  %1361 = vperm.xlu0 %1360, %v1223
  %v1362 = vpop.permute.xlu0 %1361
  %1365 = vset.pattern.permute.xlu0 0
  %1366 = vperm.xlu0 %1365, %v1224
  %v1367 = vpop.permute.xlu0 %1366
  %1370 = vset.pattern.permute.xlu0 0
  %1371 = vperm.xlu0 %1370, %v1225
  %v1372 = vpop.permute.xlu0 %1371
  %1375 = vset.pattern.permute.xlu0 0
  %1376 = vperm.xlu0 %1375, %v1226
  %v1377 = vpop.permute.xlu0 %1376
  %1380 = vset.pattern.permute.xlu0 0
  %1381 = vperm.xlu0 %1380, %v1227
  %v1382 = vpop.permute.xlu0 %1381
  %1385 = vset.pattern.permute.xlu0 0
  %1386 = vperm.xlu0 %1385, %v1228
  %v1387 = vpop.permute.xlu0 %1386
  %v1453 = vunpack.c.l.b16 %v1101
  %v1454 = vunpack.c.h.b16 %v1101
  %v1455 = vunpack.c.l.b16 %v1102
  %v1456 = vunpack.c.h.b16 %v1102
  %v1457 = vunpack.c.l.b16 %v1103
  %v1458 = vunpack.c.h.b16 %v1103
  %v1459 = vunpack.c.l.b16 %v1104
  %v1460 = vunpack.c.h.b16 %v1104
  %v1461 = vunpack.c.l.b16 %v1105
  %v1462 = vunpack.c.h.b16 %v1105
  %v1463 = vunpack.c.l.b16 %v1106
  %v1464 = vunpack.c.h.b16 %v1106
  %v1465 = vunpack.c.l.b16 %v1107
  %v1466 = vunpack.c.h.b16 %v1107
  %v1467 = vunpack.c.l.b16 %v1108
  %v1468 = vunpack.c.h.b16 %v1108
  %v1469 = vunpack.c.l.b16 %v1109
  %v1470 = vunpack.c.h.b16 %v1109
  %v1471 = vunpack.c.l.b16 %v1110
  %v1472 = vunpack.c.h.b16 %v1110
  %v1473 = vunpack.c.l.b16 %v1111
  %v1474 = vunpack.c.h.b16 %v1111
  %v1475 = vunpack.c.l.b16 %v1112
  %v1476 = vunpack.c.h.b16 %v1112
  %v1477 = vunpack.c.l.b16 %v1113
  %v1478 = vunpack.c.h.b16 %v1113
  %v1479 = vunpack.c.l.b16 %v1114
  %v1480 = vunpack.c.h.b16 %v1114
  %v1481 = vunpack.c.l.b16 %v1115
  %v1482 = vunpack.c.h.b16 %v1115
  %v1483 = vunpack.c.l.b16 %v1116
  %v1484 = vunpack.c.h.b16 %v1116
  %v1485 = vunpack.c.l.b16 %v1117
  %v1486 = vunpack.c.h.b16 %v1117
  %v1487 = vunpack.c.l.b16 %v1118
  %v1488 = vunpack.c.h.b16 %v1118
  %v1489 = vunpack.c.l.b16 %v1119
  %v1490 = vunpack.c.h.b16 %v1119
  %v1491 = vunpack.c.l.b16 %v1120
  %v1492 = vunpack.c.h.b16 %v1120
  %v1493 = vunpack.c.l.b16 %v1121
  %v1494 = vunpack.c.h.b16 %v1121
  %v1495 = vunpack.c.l.b16 %v1122
  %v1496 = vunpack.c.h.b16 %v1122
  %v1497 = vunpack.c.l.b16 %v1123
  %v1498 = vunpack.c.h.b16 %v1123
  %v1499 = vunpack.c.l.b16 %v1124
  %v1500 = vunpack.c.h.b16 %v1124
  %v1501 = vunpack.c.l.b16 %v1125
  %v1502 = vunpack.c.h.b16 %v1125
  %v1503 = vunpack.c.l.b16 %v1126
  %v1504 = vunpack.c.h.b16 %v1126
  %v1505 = vunpack.c.l.b16 %v1127
  %v1506 = vunpack.c.h.b16 %v1127
  %v1507 = vunpack.c.l.b16 %v1128
  %v1508 = vunpack.c.h.b16 %v1128
  %v1509 = vunpack.c.l.b16 %v1129
  %v1510 = vunpack.c.h.b16 %v1129
  %v1511 = vunpack.c.l.b16 %v1130
  %v1512 = vunpack.c.h.b16 %v1130
  %v1513 = vunpack.c.l.b16 %v1131
  %v1514 = vunpack.c.h.b16 %v1131
  %v1515 = vunpack.c.l.b16 %v1132
  %v1516 = vunpack.c.h.b16 %v1132
  %v1517 = vunpack.c.l.b16 %v1133
  %v1518 = vunpack.c.h.b16 %v1133
  %v1519 = vunpack.c.l.b16 %v1134
  %v1520 = vunpack.c.h.b16 %v1134
  %v1521 = vunpack.c.l.b16 %v1135
  %v1522 = vunpack.c.h.b16 %v1135
  %v1523 = vunpack.c.l.b16 %v1136
  %v1524 = vunpack.c.h.b16 %v1136
  %v1525 = vunpack.c.l.b16 %v1137
  %v1526 = vunpack.c.h.b16 %v1137
  %v1527 = vunpack.c.l.b16 %v1138
  %v1528 = vunpack.c.h.b16 %v1138
  %v1529 = vunpack.c.l.b16 %v1139
  %v1530 = vunpack.c.h.b16 %v1139
  %v1531 = vunpack.c.l.b16 %v1140
  %v1532 = vunpack.c.h.b16 %v1140
  %v1533 = vunpack.c.l.b16 %v1141
  %v1534 = vunpack.c.h.b16 %v1141
  %v1535 = vunpack.c.l.b16 %v1142
  %v1536 = vunpack.c.h.b16 %v1142
  %v1537 = vunpack.c.l.b16 %v1143
  %v1538 = vunpack.c.h.b16 %v1143
  %v1539 = vunpack.c.l.b16 %v1144
  %v1540 = vunpack.c.h.b16 %v1144
  %v1541 = vunpack.c.l.b16 %v1145
  %v1542 = vunpack.c.h.b16 %v1145
  %v1543 = vunpack.c.l.b16 %v1146
  %v1544 = vunpack.c.h.b16 %v1146
  %v1545 = vunpack.c.l.b16 %v1147
  %v1546 = vunpack.c.h.b16 %v1147
  %v1547 = vunpack.c.l.b16 %v1148
  %v1548 = vunpack.c.h.b16 %v1148
  %v1549 = vunpack.c.l.b16 %v1149
  %v1550 = vunpack.c.h.b16 %v1149
  %v1551 = vunpack.c.l.b16 %v1150
  %v1552 = vunpack.c.h.b16 %v1150
  %v1553 = vunpack.c.l.b16 %v1151
  %v1554 = vunpack.c.h.b16 %v1151
  %v1555 = vunpack.c.l.b16 %v1152
  %v1556 = vunpack.c.h.b16 %v1152
  %v1557 = vunpack.c.l.b16 %v1153
  %v1558 = vunpack.c.h.b16 %v1153
  %v1559 = vunpack.c.l.b16 %v1154
  %v1560 = vunpack.c.h.b16 %v1154
  %v1561 = vunpack.c.l.b16 %v1155
  %v1562 = vunpack.c.h.b16 %v1155
  %v1563 = vunpack.c.l.b16 %v1156
  %v1564 = vunpack.c.h.b16 %v1156
  %v1565 = vunpack.c.l.b16 %v1157
  %v1566 = vunpack.c.h.b16 %v1157
  %v1567 = vunpack.c.l.b16 %v1158
  %v1568 = vunpack.c.h.b16 %v1158
  %v1569 = vunpack.c.l.b16 %v1159
  %v1570 = vunpack.c.h.b16 %v1159
  %v1571 = vunpack.c.l.b16 %v1160
  %v1572 = vunpack.c.h.b16 %v1160
  %v1573 = vunpack.c.l.b16 %v1161
  %v1574 = vunpack.c.h.b16 %v1161
  %v1575 = vunpack.c.l.b16 %v1162
  %v1576 = vunpack.c.h.b16 %v1162
  %v1577 = vunpack.c.l.b16 %v1163
  %v1578 = vunpack.c.h.b16 %v1163
  %v1579 = vunpack.c.l.b16 %v1164
  %v1580 = vunpack.c.h.b16 %v1164
  %v1581 = vpack.c.b16 %v1457, %v1453
  %v1582 = vpack.c.b16 %v1458, %v1454
  %v1583 = vpack.c.b16 %v1459, %v1455
  %v1584 = vpack.c.b16 %v1460, %v1456
  %v1585 = vpack.c.b16 %v1465, %v1461
  %v1586 = vpack.c.b16 %v1466, %v1462
  %v1587 = vpack.c.b16 %v1467, %v1463
  %v1588 = vpack.c.b16 %v1468, %v1464
  %v1589 = vpack.c.b16 %v1473, %v1469
  %v1590 = vpack.c.b16 %v1474, %v1470
  %v1591 = vpack.c.b16 %v1475, %v1471
  %v1592 = vpack.c.b16 %v1476, %v1472
  %v1593 = vpack.c.b16 %v1481, %v1477
  %v1594 = vpack.c.b16 %v1482, %v1478
  %v1595 = vpack.c.b16 %v1483, %v1479
  %v1596 = vpack.c.b16 %v1484, %v1480
  %v1597 = vpack.c.b16 %v1489, %v1485
  %v1598 = vpack.c.b16 %v1490, %v1486
  %v1599 = vpack.c.b16 %v1491, %v1487
  %v1600 = vpack.c.b16 %v1492, %v1488
  %v1601 = vpack.c.b16 %v1497, %v1493
  %v1602 = vpack.c.b16 %v1498, %v1494
  %v1603 = vpack.c.b16 %v1499, %v1495
  %v1604 = vpack.c.b16 %v1500, %v1496
  %v1605 = vpack.c.b16 %v1505, %v1501
  %v1606 = vpack.c.b16 %v1506, %v1502
  %v1607 = vpack.c.b16 %v1507, %v1503
  %v1608 = vpack.c.b16 %v1508, %v1504
  %v1609 = vpack.c.b16 %v1513, %v1509
  %v1610 = vpack.c.b16 %v1514, %v1510
  %v1611 = vpack.c.b16 %v1515, %v1511
  %v1612 = vpack.c.b16 %v1516, %v1512
  %v1613 = vpack.c.b16 %v1521, %v1517
  %v1614 = vpack.c.b16 %v1522, %v1518
  %v1615 = vpack.c.b16 %v1523, %v1519
  %v1616 = vpack.c.b16 %v1524, %v1520
  %v1617 = vpack.c.b16 %v1529, %v1525
  %v1618 = vpack.c.b16 %v1530, %v1526
  %v1619 = vpack.c.b16 %v1531, %v1527
  %v1620 = vpack.c.b16 %v1532, %v1528
  %v1621 = vpack.c.b16 %v1537, %v1533
  %v1622 = vpack.c.b16 %v1538, %v1534
  %v1623 = vpack.c.b16 %v1539, %v1535
  %v1624 = vpack.c.b16 %v1540, %v1536
  %v1625 = vpack.c.b16 %v1545, %v1541
  %v1626 = vpack.c.b16 %v1546, %v1542
  %v1627 = vpack.c.b16 %v1547, %v1543
  %v1628 = vpack.c.b16 %v1548, %v1544
  %v1629 = vpack.c.b16 %v1553, %v1549
  %v1630 = vpack.c.b16 %v1554, %v1550
  %v1631 = vpack.c.b16 %v1555, %v1551
  %v1632 = vpack.c.b16 %v1556, %v1552
  %v1633 = vpack.c.b16 %v1561, %v1557
  %v1634 = vpack.c.b16 %v1562, %v1558
  %v1635 = vpack.c.b16 %v1563, %v1559
  %v1636 = vpack.c.b16 %v1564, %v1560
  %v1637 = vpack.c.b16 %v1569, %v1565
  %v1638 = vpack.c.b16 %v1570, %v1566
  %v1639 = vpack.c.b16 %v1571, %v1567
  %v1640 = vpack.c.b16 %v1572, %v1568
  %v1641 = vpack.c.b16 %v1577, %v1573
  %v1642 = vpack.c.b16 %v1578, %v1574
  %v1643 = vpack.c.b16 %v1579, %v1575
  %v1644 = vpack.c.b16 %v1580, %v1576
  %1709 = vmatprep.subr.bf16.mxu0 0
  %1710 = vmatpush1.bf16.msra.mxu0 %v1165
  %1711 = vmatprep.subr.bf16.mxu0 0
  %1712 = vmatpush1.bf16.msra.mxu0 %v1166
  %1713 = vmatprep.subr.bf16.mxu0 0
  %1714 = vmatpush1.bf16.msra.mxu0 %v1167
  %1715 = vmatprep.subr.bf16.mxu0 0
  %1716 = vmatpush1.bf16.msra.mxu0 %v1168
  %1717 = vmatprep.subr.bf16.mxu0 0
  %1718 = vmatpush1.bf16.msra.mxu0 %v1169
  %1719 = vmatprep.subr.bf16.mxu0 0
  %1720 = vmatpush1.bf16.msra.mxu0 %v1170
  %1721 = vmatprep.subr.bf16.mxu0 0
  %1722 = vmatpush1.bf16.msra.mxu0 %v1171
  %1723 = vmatprep.subr.bf16.mxu0 0
  %1724 = vmatpush1.bf16.msra.mxu0 %v1172
  %1725 = vmatprep.subr.bf16.mxu0 0
  %1726 = vmatpush1.bf16.msra.mxu0 %v1173
  %1727 = vmatprep.subr.bf16.mxu0 0
  %1728 = vmatpush1.bf16.msra.mxu0 %v1174
  %1729 = vmatprep.subr.bf16.mxu0 0
  %1730 = vmatpush1.bf16.msra.mxu0 %v1175
  %1731 = vmatprep.subr.bf16.mxu0 0
  %1732 = vmatpush1.bf16.msra.mxu0 %v1176
  %1733 = vmatprep.subr.bf16.mxu0 0
  %1734 = vmatpush1.bf16.msra.mxu0 %v1177
  %1735 = vmatprep.subr.bf16.mxu0 0
  %1736 = vmatpush1.bf16.msra.mxu0 %v1178
  %1737 = vmatprep.subr.bf16.mxu0 0
  %1738 = vmatpush1.bf16.msra.mxu0 %v1179
  %1739 = vmatprep.subr.bf16.mxu0 0
  %1740 = vmatpush1.bf16.msra.mxu0 %v1180
  %1741 = vmatprep.mubr.bf16.mxu0 %v1582
  %1742 = vmatmul.mubr.bf16.gmra.mrb[0].mxu0 %v1581
  %v1743 = vpop.f32.mrb[0].mxu0
  %v1744 = vadd.f32 %v1232, %v1743
  %v1745 = vpop.f32.mrb[0].mxu0
  %v1746 = vpop.f32.mrb[0].mxu0
  %v1747 = vadd.f32 %v1237, %v1746
  %v1748 = vpop.f32.mrb[0].mxu0
  %1749 = vmatprep.mubr.bf16.mxu0 %v1586
  %1750 = vmatmul.mubr.bf16.gmra.mrb[0].mxu0 %v1585
  %v1751 = vpop.f32.mrb[0].mxu0
  %v1752 = vadd.f32 %v1242, %v1751
  %v1753 = vpop.f32.mrb[0].mxu0
  %v1754 = vpop.f32.mrb[0].mxu0
  %v1755 = vadd.f32 %v1247, %v1754
  %v1756 = vpop.f32.mrb[0].mxu0
  %1757 = vmatprep.mubr.bf16.mxu0 %v1590
  %1758 = vmatmul.mubr.bf16.gmra.mrb[0].mxu0 %v1589
  %v1759 = vpop.f32.mrb[0].mxu0
  %v1760 = vadd.f32 %v1252, %v1759
  %v1761 = vpop.f32.mrb[0].mxu0
  %v1762 = vpop.f32.mrb[0].mxu0
  %v1763 = vadd.f32 %v1257, %v1762
  %v1764 = vpop.f32.mrb[0].mxu0
  %1765 = vmatprep.mubr.bf16.mxu0 %v1594
  %1766 = vmatmul.mubr.bf16.gmra.mrb[0].mxu0 %v1593
  %v1767 = vpop.f32.mrb[0].mxu0
  %v1768 = vadd.f32 %v1262, %v1767
  %v1769 = vpop.f32.mrb[0].mxu0
  %v1770 = vpop.f32.mrb[0].mxu0
  %v1771 = vadd.f32 %v1267, %v1770
  %v1772 = vpop.f32.mrb[0].mxu0
  %1773 = vmatprep.mubr.bf16.mxu0 %v1598
  %1774 = vmatmul.mubr.bf16.gmra.mrb[0].mxu0 %v1597
  %v1775 = vpop.f32.mrb[0].mxu0
  %v1776 = vadd.f32 %v1272, %v1775
  %v1777 = vpop.f32.mrb[0].mxu0
  %v1778 = vpop.f32.mrb[0].mxu0
  %v1779 = vadd.f32 %v1277, %v1778
  %v1780 = vpop.f32.mrb[0].mxu0
  %1781 = vmatprep.mubr.bf16.mxu0 %v1602
  %1782 = vmatmul.mubr.bf16.gmra.mrb[0].mxu0 %v1601
  %v1783 = vpop.f32.mrb[0].mxu0
  %v1784 = vadd.f32 %v1282, %v1783
  %v1785 = vpop.f32.mrb[0].mxu0
  %v1786 = vpop.f32.mrb[0].mxu0
  %v1787 = vadd.f32 %v1287, %v1786
  %v1788 = vpop.f32.mrb[0].mxu0
  %1789 = vmatprep.mubr.bf16.mxu0 %v1606
  %1790 = vmatmul.mubr.bf16.gmra.mrb[0].mxu0 %v1605
  %v1791 = vpop.f32.mrb[0].mxu0
  %v1792 = vadd.f32 %v1292, %v1791
  %v1793 = vpop.f32.mrb[0].mxu0
  %v1794 = vpop.f32.mrb[0].mxu0
  %v1795 = vadd.f32 %v1297, %v1794
  %v1796 = vpop.f32.mrb[0].mxu0
  %1797 = vmatprep.mubr.bf16.mxu0 %v1610
  %1798 = vmatmul.mubr.bf16.gmra.mrb[0].mxu0 %v1609
  %v1799 = vpop.f32.mrb[0].mxu0
  %v1800 = vadd.f32 %v1302, %v1799
  %v1801 = vpop.f32.mrb[0].mxu0
  %v1802 = vpop.f32.mrb[0].mxu0
  %v1803 = vadd.f32 %v1307, %v1802
  %v1804 = vpop.f32.mrb[0].mxu0
  %1805 = vmatprep.mubr.bf16.mxu0 %v1614
  %1806 = vmatmul.mubr.bf16.gmra.mrb[0].mxu0 %v1613
  %v1807 = vpop.f32.mrb[0].mxu0
  %v1808 = vadd.f32 %v1312, %v1807
  %v1809 = vpop.f32.mrb[0].mxu0
  %v1810 = vpop.f32.mrb[0].mxu0
  %v1811 = vadd.f32 %v1317, %v1810
  %v1812 = vpop.f32.mrb[0].mxu0
  %1813 = vmatprep.mubr.bf16.mxu0 %v1618
  %1814 = vmatmul.mubr.bf16.gmra.mrb[0].mxu0 %v1617
  %v1815 = vpop.f32.mrb[0].mxu0
  %v1816 = vadd.f32 %v1322, %v1815
  %v1817 = vpop.f32.mrb[0].mxu0
  %v1818 = vpop.f32.mrb[0].mxu0
  %v1819 = vadd.f32 %v1327, %v1818
  %v1820 = vpop.f32.mrb[0].mxu0
  %1821 = vmatprep.mubr.bf16.mxu0 %v1622
  %1822 = vmatmul.mubr.bf16.gmra.mrb[0].mxu0 %v1621
  %v1823 = vpop.f32.mrb[0].mxu0
  %v1824 = vadd.f32 %v1332, %v1823
  %v1825 = vpop.f32.mrb[0].mxu0
  %v1826 = vpop.f32.mrb[0].mxu0
  %v1827 = vadd.f32 %v1337, %v1826
  %v1828 = vpop.f32.mrb[0].mxu0
  %1829 = vmatprep.mubr.bf16.mxu0 %v1626
  %1830 = vmatmul.mubr.bf16.gmra.mrb[0].mxu0 %v1625
  %v1831 = vpop.f32.mrb[0].mxu0
  %v1832 = vadd.f32 %v1342, %v1831
  %v1833 = vpop.f32.mrb[0].mxu0
  %v1834 = vpop.f32.mrb[0].mxu0
  %v1835 = vadd.f32 %v1347, %v1834
  %v1836 = vpop.f32.mrb[0].mxu0
  %1837 = vmatprep.mubr.bf16.mxu0 %v1630
  %1838 = vmatmul.mubr.bf16.gmra.mrb[0].mxu0 %v1629
  %v1839 = vpop.f32.mrb[0].mxu0
  %v1840 = vadd.f32 %v1352, %v1839
  %v1841 = vpop.f32.mrb[0].mxu0
  %v1842 = vpop.f32.mrb[0].mxu0
  %v1843 = vadd.f32 %v1357, %v1842
  %v1844 = vpop.f32.mrb[0].mxu0
  %1845 = vmatprep.mubr.bf16.mxu0 %v1634
  %1846 = vmatmul.mubr.bf16.gmra.mrb[0].mxu0 %v1633
  %v1847 = vpop.f32.mrb[0].mxu0
  %v1848 = vadd.f32 %v1362, %v1847
  %v1849 = vpop.f32.mrb[0].mxu0
  %v1850 = vpop.f32.mrb[0].mxu0
  %v1851 = vadd.f32 %v1367, %v1850
  %v1852 = vpop.f32.mrb[0].mxu0
  %1853 = vmatprep.mubr.bf16.mxu0 %v1638
  %1854 = vmatmul.mubr.bf16.gmra.mrb[0].mxu0 %v1637
  %v1855 = vpop.f32.mrb[0].mxu0
  %v1856 = vadd.f32 %v1372, %v1855
  %v1857 = vpop.f32.mrb[0].mxu0
  %v1858 = vpop.f32.mrb[0].mxu0
  %v1859 = vadd.f32 %v1377, %v1858
  %v1860 = vpop.f32.mrb[0].mxu0
  %1861 = vmatprep.mubr.bf16.mxu0 %v1642
  %1862 = vmatmul.mubr.bf16.gmra.mrb[0].mxu0 %v1641
  %v1863 = vpop.f32.mrb[0].mxu0
  %v1864 = vadd.f32 %v1382, %v1863
  %v1865 = vpop.f32.mrb[0].mxu0
  %v1866 = vpop.f32.mrb[0].mxu0
  %v1867 = vadd.f32 %v1387, %v1866
  %v1868 = vpop.f32.mrb[0].mxu0
  %1869 = vdwg.mxu0
  %1870 = vmatprep.subr.bf16.mxu0 0
  %1871 = vmatpush1.bf16.msra.mxu0 %v1181
  %1872 = vmatprep.subr.bf16.mxu0 0
  %1873 = vmatpush1.bf16.msra.mxu0 %v1182
  %1874 = vmatprep.subr.bf16.mxu0 0
  %1875 = vmatpush1.bf16.msra.mxu0 %v1183
  %1876 = vmatprep.subr.bf16.mxu0 0
  %1877 = vmatpush1.bf16.msra.mxu0 %v1184
  %1878 = vmatprep.subr.bf16.mxu0 0
  %1879 = vmatpush1.bf16.msra.mxu0 %v1185
  %1880 = vmatprep.subr.bf16.mxu0 0
  %1881 = vmatpush1.bf16.msra.mxu0 %v1186
  %1882 = vmatprep.subr.bf16.mxu0 0
  %1883 = vmatpush1.bf16.msra.mxu0 %v1187
  %1884 = vmatprep.subr.bf16.mxu0 0
  %1885 = vmatpush1.bf16.msra.mxu0 %v1188
  %1886 = vmatprep.subr.bf16.mxu0 0
  %1887 = vmatpush1.bf16.msra.mxu0 %v1189
  %1888 = vmatprep.subr.bf16.mxu0 0
  %1889 = vmatpush1.bf16.msra.mxu0 %v1190
  %1890 = vmatprep.subr.bf16.mxu0 0
  %1891 = vmatpush1.bf16.msra.mxu0 %v1191
  %1892 = vmatprep.subr.bf16.mxu0 0
  %1893 = vmatpush1.bf16.msra.mxu0 %v1192
  %1894 = vmatprep.subr.bf16.mxu0 0
  %1895 = vmatpush1.bf16.msra.mxu0 %v1193
  %1896 = vmatprep.subr.bf16.mxu0 0
  %1897 = vmatpush1.bf16.msra.mxu0 %v1194
  %1898 = vmatprep.subr.bf16.mxu0 0
  %1899 = vmatpush1.bf16.msra.mxu0 %v1195
  %1900 = vmatprep.subr.bf16.mxu0 0
  %1901 = vmatpush1.bf16.msra.mxu0 %v1196
  %1902 = vmatprep.mubr.bf16.mxu0 %v1584
  %1903 = vmatmul.mubr.bf16.gmra.mrb[0].mxu0 %v1583
  %v1904 = vpop.f32.mrb[0].mxu0
  %v1905 = vadd.f32 %v1744, %v1904
  %v1906 = vpop.f32.mrb[0].mxu0
  %v1907 = vpop.f32.mrb[0].mxu0
  %v1908 = vadd.f32 %v1747, %v1907
  %v1909 = vpop.f32.mrb[0].mxu0
  %1910 = vmatprep.mubr.bf16.mxu0 %v1588
  %1911 = vmatmul.mubr.bf16.gmra.mrb[0].mxu0 %v1587
  %v1912 = vpop.f32.mrb[0].mxu0
  %v1913 = vadd.f32 %v1752, %v1912
  %v1914 = vpop.f32.mrb[0].mxu0
  %v1915 = vpop.f32.mrb[0].mxu0
  %v1916 = vadd.f32 %v1755, %v1915
  %v1917 = vpop.f32.mrb[0].mxu0
  %1918 = vmatprep.mubr.bf16.mxu0 %v1592
  %1919 = vmatmul.mubr.bf16.gmra.mrb[0].mxu0 %v1591
  %v1920 = vpop.f32.mrb[0].mxu0
  %v1921 = vadd.f32 %v1760, %v1920
  %v1922 = vpop.f32.mrb[0].mxu0
  %v1923 = vpop.f32.mrb[0].mxu0
  %v1924 = vadd.f32 %v1763, %v1923
  %v1925 = vpop.f32.mrb[0].mxu0
  %1926 = vmatprep.mubr.bf16.mxu0 %v1596
  %1927 = vmatmul.mubr.bf16.gmra.mrb[0].mxu0 %v1595
  %v1928 = vpop.f32.mrb[0].mxu0
  %v1929 = vadd.f32 %v1768, %v1928
  %v1930 = vpop.f32.mrb[0].mxu0
  %v1931 = vpop.f32.mrb[0].mxu0
  %v1932 = vadd.f32 %v1771, %v1931
  %v1933 = vpop.f32.mrb[0].mxu0
  %1934 = vmatprep.mubr.bf16.mxu0 %v1600
  %1935 = vmatmul.mubr.bf16.gmra.mrb[0].mxu0 %v1599
  %v1936 = vpop.f32.mrb[0].mxu0
  %v1937 = vadd.f32 %v1776, %v1936
  %v1938 = vpop.f32.mrb[0].mxu0
  %v1939 = vpop.f32.mrb[0].mxu0
  %v1940 = vadd.f32 %v1779, %v1939
  %v1941 = vpop.f32.mrb[0].mxu0
  %1942 = vmatprep.mubr.bf16.mxu0 %v1604
  %1943 = vmatmul.mubr.bf16.gmra.mrb[0].mxu0 %v1603
  %v1944 = vpop.f32.mrb[0].mxu0
  %v1945 = vadd.f32 %v1784, %v1944
  %v1946 = vpop.f32.mrb[0].mxu0
  %v1947 = vpop.f32.mrb[0].mxu0
  %v1948 = vadd.f32 %v1787, %v1947
  %v1949 = vpop.f32.mrb[0].mxu0
  %1950 = vmatprep.mubr.bf16.mxu0 %v1608
  %1951 = vmatmul.mubr.bf16.gmra.mrb[0].mxu0 %v1607
  %v1952 = vpop.f32.mrb[0].mxu0
  %v1953 = vadd.f32 %v1792, %v1952
  %v1954 = vpop.f32.mrb[0].mxu0
  %v1955 = vpop.f32.mrb[0].mxu0
  %v1956 = vadd.f32 %v1795, %v1955
  %v1957 = vpop.f32.mrb[0].mxu0
  %1958 = vmatprep.mubr.bf16.mxu0 %v1612
  %1959 = vmatmul.mubr.bf16.gmra.mrb[0].mxu0 %v1611
  %v1960 = vpop.f32.mrb[0].mxu0
  %v1961 = vadd.f32 %v1800, %v1960
  %v1962 = vpop.f32.mrb[0].mxu0
  %v1963 = vpop.f32.mrb[0].mxu0
  %v1964 = vadd.f32 %v1803, %v1963
  %v1965 = vpop.f32.mrb[0].mxu0
  %1966 = vmatprep.mubr.bf16.mxu0 %v1616
  %1967 = vmatmul.mubr.bf16.gmra.mrb[0].mxu0 %v1615
  %v1968 = vpop.f32.mrb[0].mxu0
  %v1969 = vadd.f32 %v1808, %v1968
  %v1970 = vpop.f32.mrb[0].mxu0
  %v1971 = vpop.f32.mrb[0].mxu0
  %v1972 = vadd.f32 %v1811, %v1971
  %v1973 = vpop.f32.mrb[0].mxu0
  %1974 = vmatprep.mubr.bf16.mxu0 %v1620
  %1975 = vmatmul.mubr.bf16.gmra.mrb[0].mxu0 %v1619
  %v1976 = vpop.f32.mrb[0].mxu0
  %v1977 = vadd.f32 %v1816, %v1976
  %v1978 = vpop.f32.mrb[0].mxu0
  %v1979 = vpop.f32.mrb[0].mxu0
  %v1980 = vadd.f32 %v1819, %v1979
  %v1981 = vpop.f32.mrb[0].mxu0
  %1982 = vmatprep.mubr.bf16.mxu0 %v1624
  %1983 = vmatmul.mubr.bf16.gmra.mrb[0].mxu0 %v1623
  %v1984 = vpop.f32.mrb[0].mxu0
  %v1985 = vadd.f32 %v1824, %v1984
  %v1986 = vpop.f32.mrb[0].mxu0
  %v1987 = vpop.f32.mrb[0].mxu0
  %v1988 = vadd.f32 %v1827, %v1987
  %v1989 = vpop.f32.mrb[0].mxu0
  %1990 = vmatprep.mubr.bf16.mxu0 %v1628
  %1991 = vmatmul.mubr.bf16.gmra.mrb[0].mxu0 %v1627
  %v1992 = vpop.f32.mrb[0].mxu0
  %v1993 = vadd.f32 %v1832, %v1992
  %v1994 = vpop.f32.mrb[0].mxu0
  %v1995 = vpop.f32.mrb[0].mxu0
  %v1996 = vadd.f32 %v1835, %v1995
  %v1997 = vpop.f32.mrb[0].mxu0
  %1998 = vmatprep.mubr.bf16.mxu0 %v1632
  %1999 = vmatmul.mubr.bf16.gmra.mrb[0].mxu0 %v1631
  %v2000 = vpop.f32.mrb[0].mxu0
  %v2001 = vadd.f32 %v1840, %v2000
  %v2002 = vpop.f32.mrb[0].mxu0
  %v2003 = vpop.f32.mrb[0].mxu0
  %v2004 = vadd.f32 %v1843, %v2003
  %v2005 = vpop.f32.mrb[0].mxu0
  %2006 = vmatprep.mubr.bf16.mxu0 %v1636
  %2007 = vmatmul.mubr.bf16.gmra.mrb[0].mxu0 %v1635
  %v2008 = vpop.f32.mrb[0].mxu0
  %v2009 = vadd.f32 %v1848, %v2008
  %v2010 = vpop.f32.mrb[0].mxu0
  %v2011 = vpop.f32.mrb[0].mxu0
  %v2012 = vadd.f32 %v1851, %v2011
  %v2013 = vpop.f32.mrb[0].mxu0
  %2014 = vmatprep.mubr.bf16.mxu0 %v1640
  %2015 = vmatmul.mubr.bf16.gmra.mrb[0].mxu0 %v1639
  %v2016 = vpop.f32.mrb[0].mxu0
  %v2017 = vadd.f32 %v1856, %v2016
  %v2018 = vpop.f32.mrb[0].mxu0
  %v2019 = vpop.f32.mrb[0].mxu0
  %v2020 = vadd.f32 %v1859, %v2019
  %v2021 = vpop.f32.mrb[0].mxu0
  %2022 = vmatprep.mubr.bf16.mxu0 %v1644
  %2023 = vmatmul.mubr.bf16.gmra.mrb[0].mxu0 %v1643
  %v2024 = vpop.f32.mrb[0].mxu0
  %v2025 = vadd.f32 %v1864, %v2024
  %v2026 = vpop.f32.mrb[0].mxu0
  %v2027 = vpop.f32.mrb[0].mxu0
  %v2028 = vadd.f32 %v1867, %v2027
  %v2029 = vpop.f32.mrb[0].mxu0
  %2030 = vdwg.mxu0
  %v2031 = vmax.f32 %v1905, 0.0
  %v2032 = vmax.f32 %v1908, 0.0
  %v2033 = vmax.f32 %v1913, 0.0
  %v2034 = vmax.f32 %v1916, 0.0
  %v2035 = vmax.f32 %v1921, 0.0
  %v2036 = vmax.f32 %v1924, 0.0
  %v2037 = vmax.f32 %v1929, 0.0
  %v2038 = vmax.f32 %v1932, 0.0
  %v2039 = vmax.f32 %v1937, 0.0
  %v2040 = vmax.f32 %v1940, 0.0
  %v2041 = vmax.f32 %v1945, 0.0
  %v2042 = vmax.f32 %v1948, 0.0
  %v2043 = vmax.f32 %v1953, 0.0
  %v2044 = vmax.f32 %v1956, 0.0
  %v2045 = vmax.f32 %v1961, 0.0
  %v2046 = vmax.f32 %v1964, 0.0
  %v2047 = vmax.f32 %v1969, 0.0
  %v2048 = vmax.f32 %v1972, 0.0
  %v2049 = vmax.f32 %v1977, 0.0
  %v2050 = vmax.f32 %v1980, 0.0
  %v2051 = vmax.f32 %v1985, 0.0
  %v2052 = vmax.f32 %v1988, 0.0
  %v2053 = vmax.f32 %v1993, 0.0
  %v2054 = vmax.f32 %v1996, 0.0
  %v2055 = vmax.f32 %v2001, 0.0
  %v2056 = vmax.f32 %v2004, 0.0
  %v2057 = vmax.f32 %v2009, 0.0
  %v2058 = vmax.f32 %v2012, 0.0
  %v2059 = vmax.f32 %v2017, 0.0
  %v2060 = vmax.f32 %v2020, 0.0
  %v2061 = vmax.f32 %v2025, 0.0
  %v2062 = vmax.f32 %v2028, 0.0
  %v2063 = vld [vmem:[%s5] sm:$0xff]
  %v2064 = vld [vmem:[%s5 + $0x8] sm:$0xff]
  %v2065 = vld [vmem:[%s5 + $0x10] sm:$0xff]
  %v2066 = vld [vmem:[%s5 + $0x18] sm:$0xff]
  %v2067 = vld [vmem:[%s5 + $0x20] sm:$0xff]
  %v2068 = vld [vmem:[%s5 + $0x28] sm:$0xff]
  %v2069 = vld [vmem:[%s5 + $0x30] sm:$0xff]
  %v2070 = vld [vmem:[%s5 + $0x38] sm:$0xff]
  %v2071 = vld [vmem:[%s5 + $0x40] sm:$0xff]
  %v2072 = vld [vmem:[%s5 + $0x48] sm:$0xff]
  %v2073 = vld [vmem:[%s5 + $0x50] sm:$0xff]
  %v2074 = vld [vmem:[%s5 + $0x58] sm:$0xff]
  %v2075 = vld [vmem:[%s5 + $0x60] sm:$0xff]
  %v2076 = vld [vmem:[%s5 + $0x68] sm:$0xff]
  %v2077 = vld [vmem:[%s5 + $0x70] sm:$0xff]
  %v2078 = vld [vmem:[%s5 + $0x78] sm:$0xff]
  %v2079 = vpack.c.bf16 %v2032, %v2031
  %v2080 = vpack.c.bf16 %v2034, %v2033
  %v2081 = vpack.c.bf16 %v2036, %v2035
  %v2082 = vpack.c.bf16 %v2038, %v2037
  %v2083 = vpack.c.bf16 %v2040, %v2039
  %v2084 = vpack.c.bf16 %v2042, %v2041
  %v2085 = vpack.c.bf16 %v2044, %v2043
  %v2086 = vpack.c.bf16 %v2046, %v2045
  %v2087 = vpack.c.bf16 %v2048, %v2047
  %v2088 = vpack.c.bf16 %v2050, %v2049
  %v2089 = vpack.c.bf16 %v2052, %v2051
  %v2090 = vpack.c.bf16 %v2054, %v2053
  %v2091 = vpack.c.bf16 %v2056, %v2055
  %v2092 = vpack.c.bf16 %v2058, %v2057
  %v2093 = vpack.c.bf16 %v2060, %v2059
  %v2094 = vpack.c.bf16 %v2062, %v2061
  %v2095 = vld [vmem:[%s6] sm:$0xff]
  %v2096 = vld [vmem:[%s6 + $0x8] sm:$0xff]
  %v2097 = vld [vmem:[%s6 + $0x10] sm:$0xff]
  %v2098 = vld [vmem:[%s6 + $0x18] sm:$0xff]
  %v2099 = vld [vmem:[%s6 + $0x20] sm:$0xff]
  %v2100 = vld [vmem:[%s6 + $0x28] sm:$0xff]
  %v2101 = vld [vmem:[%s6 + $0x30] sm:$0xff]
  %v2102 = vld [vmem:[%s6 + $0x38] sm:$0xff]
  %v2103 = vld [vmem:[%s6 + $0x40] sm:$0xff]
  %v2104 = vld [vmem:[%s6 + $0x48] sm:$0xff]
  %v2105 = vld [vmem:[%s6 + $0x50] sm:$0xff]
  %v2106 = vld [vmem:[%s6 + $0x58] sm:$0xff]
  %v2107 = vld [vmem:[%s6 + $0x60] sm:$0xff]
  %v2108 = vld [vmem:[%s6 + $0x68] sm:$0xff]
  %v2109 = vld [vmem:[%s6 + $0x70] sm:$0xff]
  %v2110 = vld [vmem:[%s6 + $0x78] sm:$0xff]
  %2112 = vset.pattern.permute.xlu0 0
  %2113 = vperm.xlu0 %2112, %v2095
  %v2114 = vpop.permute.xlu0 %2113
  %2117 = vset.pattern.permute.xlu0 0
  %2118 = vperm.xlu0 %2117, %v2096
  %v2119 = vpop.permute.xlu0 %2118
  %2122 = vset.pattern.permute.xlu0 0
  %2123 = vperm.xlu0 %2122, %v2097
  %v2124 = vpop.permute.xlu0 %2123
  %2127 = vset.pattern.permute.xlu0 0
  %2128 = vperm.xlu0 %2127, %v2098
  %v2129 = vpop.permute.xlu0 %2128
  %2132 = vset.pattern.permute.xlu0 0
  %2133 = vperm.xlu0 %2132, %v2099
  %v2134 = vpop.permute.xlu0 %2133
  %2137 = vset.pattern.permute.xlu0 0
  %2138 = vperm.xlu0 %2137, %v2100
  %v2139 = vpop.permute.xlu0 %2138
  %2142 = vset.pattern.permute.xlu0 0
  %2143 = vperm.xlu0 %2142, %v2101
  %v2144 = vpop.permute.xlu0 %2143
  %2147 = vset.pattern.permute.xlu0 0
  %2148 = vperm.xlu0 %2147, %v2102
  %v2149 = vpop.permute.xlu0 %2148
  %2152 = vset.pattern.permute.xlu0 0
  %2153 = vperm.xlu0 %2152, %v2103
  %v2154 = vpop.permute.xlu0 %2153
  %2157 = vset.pattern.permute.xlu0 0
  %2158 = vperm.xlu0 %2157, %v2104
  %v2159 = vpop.permute.xlu0 %2158
  %2162 = vset.pattern.permute.xlu0 0
  %2163 = vperm.xlu0 %2162, %v2105
  %v2164 = vpop.permute.xlu0 %2163
  %2167 = vset.pattern.permute.xlu0 0
  %2168 = vperm.xlu0 %2167, %v2106
  %v2169 = vpop.permute.xlu0 %2168
  %2172 = vset.pattern.permute.xlu0 0
  %2173 = vperm.xlu0 %2172, %v2107
  %v2174 = vpop.permute.xlu0 %2173
  %2177 = vset.pattern.permute.xlu0 0
  %2178 = vperm.xlu0 %2177, %v2108
  %v2179 = vpop.permute.xlu0 %2178
  %2182 = vset.pattern.permute.xlu0 0
  %2183 = vperm.xlu0 %2182, %v2109
  %v2184 = vpop.permute.xlu0 %2183
  %2187 = vset.pattern.permute.xlu0 0
  %2188 = vperm.xlu0 %2187, %v2110
  %v2189 = vpop.permute.xlu0 %2188
  %v2207 = vunpack.c.l.b16 %v2063
  %v2208 = vunpack.c.h.b16 %v2063
  %v2209 = vunpack.c.l.b16 %v2064
  %v2210 = vunpack.c.h.b16 %v2064
  %v2211 = vunpack.c.l.b16 %v2065
  %v2212 = vunpack.c.h.b16 %v2065
  %v2213 = vunpack.c.l.b16 %v2066
  %v2214 = vunpack.c.h.b16 %v2066
  %v2215 = vunpack.c.l.b16 %v2067
  %v2216 = vunpack.c.h.b16 %v2067
  %v2217 = vunpack.c.l.b16 %v2068
  %v2218 = vunpack.c.h.b16 %v2068
  %v2219 = vunpack.c.l.b16 %v2069
  %v2220 = vunpack.c.h.b16 %v2069
  %v2221 = vunpack.c.l.b16 %v2070
  %v2222 = vunpack.c.h.b16 %v2070
  %v2223 = vunpack.c.l.b16 %v2071
  %v2224 = vunpack.c.h.b16 %v2071
  %v2225 = vunpack.c.l.b16 %v2072
  %v2226 = vunpack.c.h.b16 %v2072
  %v2227 = vunpack.c.l.b16 %v2073
  %v2228 = vunpack.c.h.b16 %v2073
  %v2229 = vunpack.c.l.b16 %v2074
  %v2230 = vunpack.c.h.b16 %v2074
  %v2231 = vunpack.c.l.b16 %v2075
  %v2232 = vunpack.c.h.b16 %v2075
  %v2233 = vunpack.c.l.b16 %v2076
  %v2234 = vunpack.c.h.b16 %v2076
  %v2235 = vunpack.c.l.b16 %v2077
  %v2236 = vunpack.c.h.b16 %v2077
  %v2237 = vunpack.c.l.b16 %v2078
  %v2238 = vunpack.c.h.b16 %v2078
  %v2239 = vpack.c.b16 %v2209, %v2207
  %v2240 = vpack.c.b16 %v2210, %v2208
  %v2241 = vpack.c.b16 %v2213, %v2211
  %v2242 = vpack.c.b16 %v2214, %v2212
  %v2243 = vpack.c.b16 %v2217, %v2215
  %v2244 = vpack.c.b16 %v2218, %v2216
  %v2245 = vpack.c.b16 %v2221, %v2219
  %v2246 = vpack.c.b16 %v2222, %v2220
  %v2247 = vpack.c.b16 %v2225, %v2223
  %v2248 = vpack.c.b16 %v2226, %v2224
  %v2249 = vpack.c.b16 %v2229, %v2227
  %v2250 = vpack.c.b16 %v2230, %v2228
  %v2251 = vpack.c.b16 %v2233, %v2231
  %v2252 = vpack.c.b16 %v2234, %v2232
  %v2253 = vpack.c.b16 %v2237, %v2235
  %v2254 = vpack.c.b16 %v2238, %v2236
  %2271 = vmatprep.subr.bf16.mxu0 0
  %2272 = vmatpush1.bf16.msra.mxu0 %v2079
  %2273 = vmatprep.subr.bf16.mxu0 0
  %2274 = vmatpush1.bf16.msra.mxu0 %v2080
  %2275 = vmatprep.subr.bf16.mxu0 0
  %2276 = vmatpush1.bf16.msra.mxu0 %v2081
  %2277 = vmatprep.subr.bf16.mxu0 0
  %2278 = vmatpush1.bf16.msra.mxu0 %v2082
  %2279 = vmatprep.subr.bf16.mxu0 0
  %2280 = vmatpush1.bf16.msra.mxu0 %v2083
  %2281 = vmatprep.subr.bf16.mxu0 0
  %2282 = vmatpush1.bf16.msra.mxu0 %v2084
  %2283 = vmatprep.subr.bf16.mxu0 0
  %2284 = vmatpush1.bf16.msra.mxu0 %v2085
  %2285 = vmatprep.subr.bf16.mxu0 0
  %2286 = vmatpush1.bf16.msra.mxu0 %v2086
  %2287 = vmatprep.subr.bf16.mxu0 0
  %2288 = vmatpush1.bf16.msra.mxu0 %v2087
  %2289 = vmatprep.subr.bf16.mxu0 0
  %2290 = vmatpush1.bf16.msra.mxu0 %v2088
  %2291 = vmatprep.subr.bf16.mxu0 0
  %2292 = vmatpush1.bf16.msra.mxu0 %v2089
  %2293 = vmatprep.subr.bf16.mxu0 0
  %2294 = vmatpush1.bf16.msra.mxu0 %v2090
  %2295 = vmatprep.subr.bf16.mxu0 0
  %2296 = vmatpush1.bf16.msra.mxu0 %v2091
  %2297 = vmatprep.subr.bf16.mxu0 0
  %2298 = vmatpush1.bf16.msra.mxu0 %v2092
  %2299 = vmatprep.subr.bf16.mxu0 0
  %2300 = vmatpush1.bf16.msra.mxu0 %v2093
  %2301 = vmatprep.subr.bf16.mxu0 0
  %2302 = vmatpush1.bf16.msra.mxu0 %v2094
  %2303 = vmatprep.mubr.bf16.mxu0 %v2240
  %2304 = vmatmul.mubr.bf16.gmra.mrb[0].mxu0 %v2239
  %v2305 = vpop.f32.mrb[0].mxu0
  %v2306 = vadd.f32 %v2114, %v2305
  %v2307 = vpop.f32.mrb[0].mxu0
  %v2308 = vpop.f32.mrb[0].mxu0
  %v2309 = vadd.f32 %v2119, %v2308
  %v2310 = vpop.f32.mrb[0].mxu0
  %2311 = vmatprep.mubr.bf16.mxu0 %v2242
  %2312 = vmatmul.mubr.bf16.gmra.mrb[0].mxu0 %v2241
  %v2313 = vpop.f32.mrb[0].mxu0
  %v2314 = vadd.f32 %v2124, %v2313
  %v2315 = vpop.f32.mrb[0].mxu0
  %v2316 = vpop.f32.mrb[0].mxu0
  %v2317 = vadd.f32 %v2129, %v2316
  %v2318 = vpop.f32.mrb[0].mxu0
  %2319 = vmatprep.mubr.bf16.mxu0 %v2244
  %2320 = vmatmul.mubr.bf16.gmra.mrb[0].mxu0 %v2243
  %v2321 = vpop.f32.mrb[0].mxu0
  %v2322 = vadd.f32 %v2134, %v2321
  %v2323 = vpop.f32.mrb[0].mxu0
  %v2324 = vpop.f32.mrb[0].mxu0
  %v2325 = vadd.f32 %v2139, %v2324
  %v2326 = vpop.f32.mrb[0].mxu0
  %2327 = vmatprep.mubr.bf16.mxu0 %v2246
  %2328 = vmatmul.mubr.bf16.gmra.mrb[0].mxu0 %v2245
  %v2329 = vpop.f32.mrb[0].mxu0
  %v2330 = vadd.f32 %v2144, %v2329
  %v2331 = vpop.f32.mrb[0].mxu0
  %v2332 = vpop.f32.mrb[0].mxu0
  %v2333 = vadd.f32 %v2149, %v2332
  %v2334 = vpop.f32.mrb[0].mxu0
  %2335 = vmatprep.mubr.bf16.mxu0 %v2248
  %2336 = vmatmul.mubr.bf16.gmra.mrb[0].mxu0 %v2247
  %v2337 = vpop.f32.mrb[0].mxu0
  %v2338 = vadd.f32 %v2154, %v2337
  %v2339 = vpop.f32.mrb[0].mxu0
  %v2340 = vpop.f32.mrb[0].mxu0
  %v2341 = vadd.f32 %v2159, %v2340
  %v2342 = vpop.f32.mrb[0].mxu0
  %2343 = vmatprep.mubr.bf16.mxu0 %v2250
  %2344 = vmatmul.mubr.bf16.gmra.mrb[0].mxu0 %v2249
  %v2345 = vpop.f32.mrb[0].mxu0
  %v2346 = vadd.f32 %v2164, %v2345
  %v2347 = vpop.f32.mrb[0].mxu0
  %v2348 = vpop.f32.mrb[0].mxu0
  %v2349 = vadd.f32 %v2169, %v2348
  %v2350 = vpop.f32.mrb[0].mxu0
  %2351 = vmatprep.mubr.bf16.mxu0 %v2252
  %2352 = vmatmul.mubr.bf16.gmra.mrb[0].mxu0 %v2251
  %v2353 = vpop.f32.mrb[0].mxu0
  %v2354 = vadd.f32 %v2174, %v2353
  %v2355 = vpop.f32.mrb[0].mxu0
  %v2356 = vpop.f32.mrb[0].mxu0
  %v2357 = vadd.f32 %v2179, %v2356
  %v2358 = vpop.f32.mrb[0].mxu0
  %2359 = vmatprep.mubr.bf16.mxu0 %v2254
  %2360 = vmatmul.mubr.bf16.gmra.mrb[0].mxu0 %v2253
  %v2361 = vpop.f32.mrb[0].mxu0
  %v2362 = vadd.f32 %v2184, %v2361
  %v2363 = vpop.f32.mrb[0].mxu0
  %v2364 = vpop.f32.mrb[0].mxu0
  %v2365 = vadd.f32 %v2189, %v2364
  %v2366 = vpop.f32.mrb[0].mxu0
  %2367 = vdwg.mxu0
  %v2368 = vmax.f32 %v2306, 0.0
  %v2369 = vmax.f32 %v2309, 0.0
  %v2370 = vmax.f32 %v2314, 0.0
  %v2371 = vmax.f32 %v2317, 0.0
  %v2372 = vmax.f32 %v2322, 0.0
  %v2373 = vmax.f32 %v2325, 0.0
  %v2374 = vmax.f32 %v2330, 0.0
  %v2375 = vmax.f32 %v2333, 0.0
  %v2376 = vmax.f32 %v2338, 0.0
  %v2377 = vmax.f32 %v2341, 0.0
  %v2378 = vmax.f32 %v2346, 0.0
  %v2379 = vmax.f32 %v2349, 0.0
  %v2380 = vmax.f32 %v2354, 0.0
  %v2381 = vmax.f32 %v2357, 0.0
  %v2382 = vmax.f32 %v2362, 0.0
  %v2383 = vmax.f32 %v2365, 0.0
  %v2384 = vld [vmem:[%s7] sm:$0xff]
  %v2385 = vld [vmem:[%s7 + $0x8] sm:$0xff]
  %v2386 = vld [vmem:[%s7 + $0x10] sm:$0xff]
  %v2387 = vld [vmem:[%s7 + $0x18] sm:$0xff]
  %v2388 = vld [vmem:[%s7 + $0x20] sm:$0xff]
  %v2389 = vld [vmem:[%s7 + $0x28] sm:$0xff]
  %v2390 = vld [vmem:[%s7 + $0x30] sm:$0xff]
  %v2391 = vld [vmem:[%s7 + $0x38] sm:$0xff]
  %v2392 = vld [vmem:[%s7 + $0x40] sm:$0xff]
  %v2393 = vld [vmem:[%s7 + $0x48] sm:$0xff]
  %v2394 = vld [vmem:[%s7 + $0x50] sm:$0xff]
  %v2395 = vld [vmem:[%s7 + $0x58] sm:$0xff]
  %v2396 = vld [vmem:[%s7 + $0x60] sm:$0xff]
  %v2397 = vld [vmem:[%s7 + $0x68] sm:$0xff]
  %v2398 = vld [vmem:[%s7 + $0x70] sm:$0xff]
  %v2399 = vld [vmem:[%s7 + $0x78] sm:$0xff]
  %2401 = vset.pattern.permute.xlu0 0
  %2402 = vperm.xlu0 %2401, %v2384
  %v2403 = vpop.permute.xlu0 %2402
  %2406 = vset.pattern.permute.xlu0 0
  %2407 = vperm.xlu0 %2406, %v2385
  %v2408 = vpop.permute.xlu0 %2407
  %2411 = vset.pattern.permute.xlu0 0
  %2412 = vperm.xlu0 %2411, %v2386
  %v2413 = vpop.permute.xlu0 %2412
  %2416 = vset.pattern.permute.xlu0 0
  %2417 = vperm.xlu0 %2416, %v2387
  %v2418 = vpop.permute.xlu0 %2417
  %2421 = vset.pattern.permute.xlu0 0
  %2422 = vperm.xlu0 %2421, %v2388
  %v2423 = vpop.permute.xlu0 %2422
  %2426 = vset.pattern.permute.xlu0 0
  %2427 = vperm.xlu0 %2426, %v2389
  %v2428 = vpop.permute.xlu0 %2427
  %2431 = vset.pattern.permute.xlu0 0
  %2432 = vperm.xlu0 %2431, %v2390
  %v2433 = vpop.permute.xlu0 %2432
  %2436 = vset.pattern.permute.xlu0 0
  %2437 = vperm.xlu0 %2436, %v2391
  %v2438 = vpop.permute.xlu0 %2437
  %2441 = vset.pattern.permute.xlu0 0
  %2442 = vperm.xlu0 %2441, %v2392
  %v2443 = vpop.permute.xlu0 %2442
  %2446 = vset.pattern.permute.xlu0 0
  %2447 = vperm.xlu0 %2446, %v2393
  %v2448 = vpop.permute.xlu0 %2447
  %2451 = vset.pattern.permute.xlu0 0
  %2452 = vperm.xlu0 %2451, %v2394
  %v2453 = vpop.permute.xlu0 %2452
  %2456 = vset.pattern.permute.xlu0 0
  %2457 = vperm.xlu0 %2456, %v2395
  %v2458 = vpop.permute.xlu0 %2457
  %2461 = vset.pattern.permute.xlu0 0
  %2462 = vperm.xlu0 %2461, %v2396
  %v2463 = vpop.permute.xlu0 %2462
  %2466 = vset.pattern.permute.xlu0 0
  %2467 = vperm.xlu0 %2466, %v2397
  %v2468 = vpop.permute.xlu0 %2467
  %2471 = vset.pattern.permute.xlu0 0
  %2472 = vperm.xlu0 %2471, %v2398
  %v2473 = vpop.permute.xlu0 %2472
  %2476 = vset.pattern.permute.xlu0 0
  %2477 = vperm.xlu0 %2476, %v2399
  %v2478 = vpop.permute.xlu0 %2477
  %v2480 = vmul.f32 %v2368, %v2403
  %v2481 = vmul.f32 %v2369, %v2408
  %v2482 = vmul.f32 %v2370, %v2413
  %v2483 = vmul.f32 %v2371, %v2418
  %v2484 = vmul.f32 %v2372, %v2423
  %v2485 = vmul.f32 %v2373, %v2428
  %v2486 = vmul.f32 %v2374, %v2433
  %v2487 = vmul.f32 %v2375, %v2438
  %v2488 = vmul.f32 %v2376, %v2443
  %v2489 = vmul.f32 %v2377, %v2448
  %v2490 = vmul.f32 %v2378, %v2453
  %v2491 = vmul.f32 %v2379, %v2458
  %v2492 = vmul.f32 %v2380, %v2463
  %v2493 = vmul.f32 %v2381, %v2468
  %v2494 = vmul.f32 %v2382, %v2473
  %v2495 = vmul.f32 %v2383, %v2478
  %v2496 = vadd.f32 %v2480, %v2481
  %v2497 = vadd.f32 %v2496, %v2482
  %v2498 = vadd.f32 %v2497, %v2483
  %v2499 = vadd.f32 %v2498, %v2484
  %v2500 = vadd.f32 %v2499, %v2485
  %v2501 = vadd.f32 %v2500, %v2486
  %v2502 = vadd.f32 %v2501, %v2487
  %v2503 = vadd.f32 %v2502, %v2488
  %v2504 = vadd.f32 %v2503, %v2489
  %v2505 = vadd.f32 %v2504, %v2490
  %v2506 = vadd.f32 %v2505, %v2491
  %v2507 = vadd.f32 %v2506, %v2492
  %v2508 = vadd.f32 %v2507, %v2493
  %v2509 = vadd.f32 %v2508, %v2494
  %v2510 = vadd.f32 %v2509, %v2495
  %v2511 = vrot.slane %v2510, 4
  %v2512 = vadd.f32 %v2510, %v2511
  %v2513 = vrot.slane %v2512, 2
  %v2514 = vadd.f32 %v2512, %v2513
  %v2515 = vrot.slane %v2514, 1
  %v2516 = vadd.f32 %v2514, %v2515
  %v2517 = vld [vmem:[#allocation2] sm:$0x1]
  %2519 = vset.pattern.permute.xlu0 0
  %2520 = vperm.xlu0 %2519, %v2517
  %v2521 = vpop.permute.xlu0 %2520
  %v2523 = vlaneseq
  %v2524 = vshrl.u32 %v2523, 7
  %v2525 = vsub.s32 0, %v2524
  %v2526 = vrot.slane %v2521, %v2525
  %v2527 = vadd.f32 %v2516, %v2526
  %2528 = vst [vmem:[%s9] sm:$0x1] %v2527
  // Predicated region
  $region38: #{heart_disease_net_forward.1} parent=0 // pred_check
    _
  $region39: #{heart_disease_net_forward.1} parent=0 // pred_check_branch
    %2530 = sbr.rel (0) target = $region41
  $region40: #{heart_disease_net_forward.1} parent=0 // pred_region
    _
  $region41: #{heart_disease_net_forward.1} parent=0 // pred_fallthru
    _
  // Predicated region
  $region42: #{heart_disease_net_forward.1} parent=0 // pred_check
    _
  $region43: #{heart_disease_net_forward.1} parent=0 // pred_check_branch
    %2532 = sbr.rel (0) target = $region45
  $region44: #{heart_disease_net_forward.1} parent=0 // pred_region
    _
  $region45: #{heart_disease_net_forward.1} parent=0 // pred_fallthru
    _

</llo_original>
